<compile_context>
chip_gen: v5e
topology: v5e:2x2
jax: 0.10.0
libtpu: 0.0.40
codegen_flags: <defaults>
</compile_context>

<pallas_src>
import jax
import jax.numpy as jnp
from jax.experimental import pallas as pl
from jax.experimental.pallas import tpu as pltpu


def _conv3x3_im2col_kernel(x_ref, w_ref, o_ref, xpad_ref, col_ref):
    """3x3 conv (stride 1, pad 1) for one (branch, batch) grid point.

    x_ref   : (1, H, W, Cin)      unpadded NHWC input tile
    w_ref   : (1, 9*Cin, Cout)    branch weights, flattened (ky, kx, cin)
    o_ref   : (1, H, W, Cout)     output tile
    xpad_ref: (H+2, W+2, Cin)     VMEM scratch holding the zero-padded image
    col_ref : (H*W, 9*Cin)        VMEM scratch holding the im2col matrix
    """
    _, H, W, Cin = x_ref.shape
    Cout = o_ref.shape[-1]

    # Zero-padding happens entirely in VMEM (no HBM pad round-trip).
    # Re-zero every grid step so correctness does not depend on how the
    # parallel grid is sharded across TensorCores.
    xpad_ref[...] = jnp.zeros_like(xpad_ref)
    xpad_ref[1:H + 1, 1:W + 1, :] = x_ref[0]

    # im2col into VMEM scratch; column order (ky, kx, cin) matches the
    # (3, 3, Cin, Cout) -> (9*Cin, Cout) weight reshape done in the wrapper.
    for ky in range(3):
        for kx in range(3):
            k0 = (3 * ky + kx) * Cin
            col_ref[:, k0:k0 + Cin] = (
                xpad_ref[ky:ky + H, kx:kx + W, :].reshape(H * W, Cin))

    # One fat matmul (K = 9*Cin) with f32 accumulation on the MXU.
    acc = jnp.dot(col_ref[...], w_ref[0], preferred_element_type=jnp.float32)
    o_ref[...] = acc.reshape(1, H, W, Cout).astype(o_ref.dtype)


@jax.jit
def conv3x3_parallel_pallas(x_stack_nchw, w_stack_hwio):
    """All-branch 3x3 conv, stride=1, padding=1, no bias.

    x_stack_nchw: (P, N, Cin, H, W)    stacked per-branch inputs (NCHW)
    w_stack_hwio: (P, 3, 3, Cin, Cout) stacked per-branch weights (HWIO)
    returns:      (P, N, Cout, H, W)
    """
    P, N, Cin, H, W = x_stack_nchw.shape
    Cout = w_stack_hwio.shape[-1]

    # One transpose for all branches, then fold (P, N) into the leading axis.
    x_nhwc = jnp.transpose(x_stack_nchw, (0, 1, 3, 4, 2)).reshape(
        P * N, H, W, Cin)
    w_flat = w_stack_hwio.reshape(P, 9 * Cin, Cout)

    # VMEM budget: double-buffered in/out/weight blocks + scratches, with
    # headroom, clamped so it is valid on every generation (<= 64 MiB).
    blk_bytes = 4 * (H * W * Cin + H * W * Cout + 9 * Cin * Cout)
    scr_bytes = 4 * ((H + 2) * (W + 2) * Cin + H * W * 9 * Cin)
    vmem_limit = int(min(max(4 * (2 * blk_bytes + scr_bytes), 16 * 1024 * 1024),
                         64 * 1024 * 1024))

    out = pl.pallas_call(
        _conv3x3_im2col_kernel,
        out_shape=jax.ShapeDtypeStruct((P * N, H, W, Cout), x_stack_nchw.dtype),
        grid_spec=pltpu.PrefetchScalarGridSpec(
            num_scalar_prefetch=0,
            grid=(P, N),
            in_specs=[
                pl.BlockSpec((1, H, W, Cin),
                             lambda p, n: (p * N + n, 0, 0, 0)),
                pl.BlockSpec((1, 9 * Cin, Cout),
                             lambda p, n: (p, 0, 0)),
            ],
            out_specs=pl.BlockSpec((1, H, W, Cout),
                                   lambda p, n: (p * N + n, 0, 0, 0)),
            scratch_shapes=[
                pltpu.VMEM((H + 2, W + 2, Cin), jnp.float32),
                pltpu.VMEM((H * W, 9 * Cin), jnp.float32),
            ],
        ),
        compiler_params=pltpu.CompilerParams(
            dimension_semantics=("parallel", "parallel"),
            vmem_limit_bytes=vmem_limit),
    )(x_nhwc, w_flat)

    out = out.reshape(P, N, H, W, Cout)
    return jnp.transpose(out, (0, 1, 4, 2, 3))   # back to NCHW per branch


class Conv3x3ParallelPallas:
    """JAX/Pallas port of conv3x3Parallel (stride=1, bias=False)."""

    def __init__(self, in_planes, out_planes, num_parallel, key):
        ws = []
        for _ in range(num_parallel):
            key, sub = jax.random.split(key)
            # Deterministic synthetic init (PyTorch would kaiming-init OIHW).
            w_oihw = jax.random.normal(
                sub, (out_planes, in_planes, 3, 3), jnp.float32) * 0.1
            ws.append(jnp.transpose(w_oihw, (2, 3, 1, 0)))   # OIHW -> HWIO
        self.weights_hwio = jnp.stack(ws)          # (P, 3, 3, Cin, Cout)

    def __call__(self, x_parallel_nchw):
        x_stack = jnp.stack(x_parallel_nchw)        # (P, N, Cin, H, W)
        y_stack = conv3x3_parallel_pallas(x_stack, self.weights_hwio)
        return [y_stack[i] for i in range(y_stack.shape[0])]


def _reference_conv(x_nchw, w_hwio):
    w_oihw = jnp.transpose(w_hwio, (3, 2, 0, 1))
    return jax.lax.conv_general_dilated(
        x_nchw, w_oihw, window_strides=(1, 1), padding="SAME",
        dimension_numbers=("NCHW", "OIHW", "NCHW"))


if __name__ == "__main__":
    key = jax.random.PRNGKey(0)
    N, Cin, Cout, H, W = 2, 4, 8, 16, 16
    num_parallel = 2

    key, k_mod = jax.random.split(key)
    module = Conv3x3ParallelPallas(Cin, Cout, num_parallel, k_mod)

    x_parallel = []
    for _ in range(num_parallel):
        key, kx = jax.random.split(key)
        x_parallel.append(jax.random.normal(kx, (N, Cin, H, W), jnp.float32))

    outs = module(x_parallel)
    outs = [jax.block_until_ready(o) for o in outs]

    # sanity check against XLA's conv
    for i in range(num_parallel):
        ref = _reference_conv(x_parallel[i], module.weights_hwio[i])
        assert outs[i].shape == (N, Cout, H, W)
        assert jnp.allclose(outs[i], ref, atol=1e-4, rtol=1e-4)

    print("KERNEL_OK")
</pallas_src>

<mosaic_0001>
module attributes {stable_mosaic.version = 11 : i64} {
  func.func @_conv3x3_im2col_kernel(%arg0: i32, %arg1: i32, %arg2: memref<1x16x16x4xf32, #tpu.memory_space<vmem>>, %arg3: memref<1x36x8xf32, #tpu.memory_space<vmem>>, %arg4: memref<1x16x16x8xf32, #tpu.memory_space<vmem>>, %arg5: memref<18x18x4xf32, #tpu.memory_space<vmem>>, %arg6: memref<256x36xf32, #tpu.memory_space<vmem>>) attributes {dimension_semantics = [#tpu.dimension_semantics<parallel>, #tpu.dimension_semantics<parallel>], iteration_bounds = array<i64: 2, 2>, scalar_prefetch = 0 : i64, scratch_operands = 2 : i64, tpu.core_type = #tpu.core_type<tc>, window_params = [{transform_indices = @transform_0, window_bounds = array<i64: 1, 16, 16, 4>}, {transform_indices = @transform_1, window_bounds = array<i64: 1, 36, 8>}, {transform_indices = @transform_2, window_bounds = array<i64: 1, 16, 16, 8>}]} {
    %cst = arith.constant 0.000000e+00 : f32
    %0 = vector.broadcast %cst : f32 to vector<18x18x4xf32>
    %c0 = arith.constant 0 : index
    %c0_0 = arith.constant 0 : index
    %c0_1 = arith.constant 0 : index
    %1 = vector.load %arg5[%c0, %c0_0, %c0_1] : memref<18x18x4xf32, #tpu.memory_space<vmem>>, vector<18x18x4xf32>
    tpu.vector_store %arg5[%c0, %c0_0, %c0_1], %0 {strides = array<i32>} : memref<18x18x4xf32, #tpu.memory_space<vmem>>, vector<18x18x4xf32>,
    %c0_2 = arith.constant 0 : index
    %c0_3 = arith.constant 0 : index
    %c0_4 = arith.constant 0 : index
    %c0_5 = arith.constant 0 : index
    %2 = vector.load %arg2[%c0_2, %c0_3, %c0_4, %c0_5] : memref<1x16x16x4xf32, #tpu.memory_space<vmem>>, vector<1x16x16x4xf32>
    %3 = vector.shape_cast %2 : vector<1x16x16x4xf32> to vector<16x16x4xf32>
    %c1 = arith.constant 1 : index
    %c1_6 = arith.constant 1 : index
    %c0_7 = arith.constant 0 : index
    %4 = vector.load %arg5[%c1, %c1_6, %c0_7] : memref<18x18x4xf32, #tpu.memory_space<vmem>>, vector<16x16x4xf32>
    tpu.vector_store %arg5[%c1, %c1_6, %c0_7], %3 {strides = array<i32>} : memref<18x18x4xf32, #tpu.memory_space<vmem>>, vector<16x16x4xf32>,
    %c0_8 = arith.constant 0 : index
    %c0_9 = arith.constant 0 : index
    %c0_10 = arith.constant 0 : index
    %5 = vector.load %arg5[%c0_8, %c0_9, %c0_10] : memref<18x18x4xf32, #tpu.memory_space<vmem>>, vector<16x16x4xf32>
    %6 = vector.shape_cast %5 : vector<16x16x4xf32> to vector<256x4xf32>
    %c0_11 = arith.constant 0 : index
    %c0_12 = arith.constant 0 : index
    %7 = vector.load %arg6[%c0_11, %c0_12] : memref<256x36xf32, #tpu.memory_space<vmem>>, vector<256x4xf32>
    tpu.vector_store %arg6[%c0_11, %c0_12], %6 {strides = array<i32>} : memref<256x36xf32, #tpu.memory_space<vmem>>, vector<256x4xf32>,
    %c0_13 = arith.constant 0 : index
    %c1_14 = arith.constant 1 : index
    %c0_15 = arith.constant 0 : index
    %8 = vector.load %arg5[%c0_13, %c1_14, %c0_15] : memref<18x18x4xf32, #tpu.memory_space<vmem>>, vector<16x16x4xf32>
    %9 = vector.shape_cast %8 : vector<16x16x4xf32> to vector<256x4xf32>
    %c0_16 = arith.constant 0 : index
    %c4 = arith.constant 4 : index
    %10 = vector.load %arg6[%c0_16, %c4] : memref<256x36xf32, #tpu.memory_space<vmem>>, vector<256x4xf32>
    tpu.vector_store %arg6[%c0_16, %c4], %9 {strides = array<i32>} : memref<256x36xf32, #tpu.memory_space<vmem>>, vector<256x4xf32>,
    %c0_17 = arith.constant 0 : index
    %c2 = arith.constant 2 : index
    %c0_18 = arith.constant 0 : index
    %11 = vector.load %arg5[%c0_17, %c2, %c0_18] : memref<18x18x4xf32, #tpu.memory_space<vmem>>, vector<16x16x4xf32>
    %12 = vector.shape_cast %11 : vector<16x16x4xf32> to vector<256x4xf32>
    %c0_19 = arith.constant 0 : index
    %c8 = arith.constant 8 : index
    %13 = vector.load %arg6[%c0_19, %c8] : memref<256x36xf32, #tpu.memory_space<vmem>>, vector<256x4xf32>
    tpu.vector_store %arg6[%c0_19, %c8], %12 {strides = array<i32>} : memref<256x36xf32, #tpu.memory_space<vmem>>, vector<256x4xf32>,
    %c1_20 = arith.constant 1 : index
    %c0_21 = arith.constant 0 : index
    %c0_22 = arith.constant 0 : index
    %14 = vector.load %arg5[%c1_20, %c0_21, %c0_22] : memref<18x18x4xf32, #tpu.memory_space<vmem>>, vector<16x16x4xf32>
    %15 = vector.shape_cast %14 : vector<16x16x4xf32> to vector<256x4xf32>
    %c0_23 = arith.constant 0 : index
    %c12 = arith.constant 12 : index
    %16 = vector.load %arg6[%c0_23, %c12] : memref<256x36xf32, #tpu.memory_space<vmem>>, vector<256x4xf32>
    tpu.vector_store %arg6[%c0_23, %c12], %15 {strides = array<i32>} : memref<256x36xf32, #tpu.memory_space<vmem>>, vector<256x4xf32>,
    %c1_24 = arith.constant 1 : index
    %c1_25 = arith.constant 1 : index
    %c0_26 = arith.constant 0 : index
    %17 = vector.load %arg5[%c1_24, %c1_25, %c0_26] : memref<18x18x4xf32, #tpu.memory_space<vmem>>, vector<16x16x4xf32>
    %18 = vector.shape_cast %17 : vector<16x16x4xf32> to vector<256x4xf32>
    %c0_27 = arith.constant 0 : index
    %c16 = arith.constant 16 : index
    %19 = vector.load %arg6[%c0_27, %c16] : memref<256x36xf32, #tpu.memory_space<vmem>>, vector<256x4xf32>
    tpu.vector_store %arg6[%c0_27, %c16], %18 {strides = array<i32>} : memref<256x36xf32, #tpu.memory_space<vmem>>, vector<256x4xf32>,
    %c1_28 = arith.constant 1 : index
    %c2_29 = arith.constant 2 : index
    %c0_30 = arith.constant 0 : index
    %20 = vector.load %arg5[%c1_28, %c2_29, %c0_30] : memref<18x18x4xf32, #tpu.memory_space<vmem>>, vector<16x16x4xf32>
    %21 = vector.shape_cast %20 : vector<16x16x4xf32> to vector<256x4xf32>
    %c0_31 = arith.constant 0 : index
    %c20 = arith.constant 20 : index
    %22 = vector.load %arg6[%c0_31, %c20] : memref<256x36xf32, #tpu.memory_space<vmem>>, vector<256x4xf32>
    tpu.vector_store %arg6[%c0_31, %c20], %21 {strides = array<i32>} : memref<256x36xf32, #tpu.memory_space<vmem>>, vector<256x4xf32>,
    %c2_32 = arith.constant 2 : index
    %c0_33 = arith.constant 0 : index
    %c0_34 = arith.constant 0 : index
    %23 = vector.load %arg5[%c2_32, %c0_33, %c0_34] : memref<18x18x4xf32, #tpu.memory_space<vmem>>, vector<16x16x4xf32>
    %24 = vector.shape_cast %23 : vector<16x16x4xf32> to vector<256x4xf32>
    %c0_35 = arith.constant 0 : index
    %c24 = arith.constant 24 : index
    %25 = vector.load %arg6[%c0_35, %c24] : memref<256x36xf32, #tpu.memory_space<vmem>>, vector<256x4xf32>
    tpu.vector_store %arg6[%c0_35, %c24], %24 {strides = array<i32>} : memref<256x36xf32, #tpu.memory_space<vmem>>, vector<256x4xf32>,
    %c2_36 = arith.constant 2 : index
    %c1_37 = arith.constant 1 : index
    %c0_38 = arith.constant 0 : index
    %26 = vector.load %arg5[%c2_36, %c1_37, %c0_38] : memref<18x18x4xf32, #tpu.memory_space<vmem>>, vector<16x16x4xf32>
    %27 = vector.shape_cast %26 : vector<16x16x4xf32> to vector<256x4xf32>
    %c0_39 = arith.constant 0 : index
    %c28 = arith.constant 28 : index
    %28 = vector.load %arg6[%c0_39, %c28] : memref<256x36xf32, #tpu.memory_space<vmem>>, vector<256x4xf32>
    tpu.vector_store %arg6[%c0_39, %c28], %27 {strides = array<i32>} : memref<256x36xf32, #tpu.memory_space<vmem>>, vector<256x4xf32>,
    %c2_40 = arith.constant 2 : index
    %c2_41 = arith.constant 2 : index
    %c0_42 = arith.constant 0 : index
    %29 = vector.load %arg5[%c2_40, %c2_41, %c0_42] : memref<18x18x4xf32, #tpu.memory_space<vmem>>, vector<16x16x4xf32>
    %30 = vector.shape_cast %29 : vector<16x16x4xf32> to vector<256x4xf32>
    %c0_43 = arith.constant 0 : index
    %c32 = arith.constant 32 : index
    %31 = vector.load %arg6[%c0_43, %c32] : memref<256x36xf32, #tpu.memory_space<vmem>>, vector<256x4xf32>
    tpu.vector_store %arg6[%c0_43, %c32], %30 {strides = array<i32>} : memref<256x36xf32, #tpu.memory_space<vmem>>, vector<256x4xf32>,
    %c0_44 = arith.constant 0 : index
    %c0_45 = arith.constant 0 : index
    %32 = vector.load %arg6[%c0_44, %c0_45] : memref<256x36xf32, #tpu.memory_space<vmem>>, vector<256x36xf32>
    %c0_46 = arith.constant 0 : index
    %c0_47 = arith.constant 0 : index
    %c0_48 = arith.constant 0 : index
    %33 = vector.load %arg3[%c0_46, %c0_47, %c0_48] : memref<1x36x8xf32, #tpu.memory_space<vmem>>, vector<1x36x8xf32>
    %34 = vector.shape_cast %33 : vector<1x36x8xf32> to vector<36x8xf32>
    %cst_49 = arith.constant dense<0.000000e+00> : vector<256x8xf32>
    %35 = tpu.matmul %32, %34, %cst_49 {dimension_numbers = #tpu.dot_dimension_numbers<[1], [0], [0], [1], [0, 0, 1, 1], [], []>} : vector<256x36xf32>, vector<36x8xf32>, vector<256x8xf32> -> vector<256x8xf32>
    %36 = vector.shape_cast %35 : vector<256x8xf32> to vector<1x16x16x8xf32>
    %c0_50 = arith.constant 0 : index
    %c0_51 = arith.constant 0 : index
    %c0_52 = arith.constant 0 : index
    %c0_53 = arith.constant 0 : index
    %37 = vector.load %arg4[%c0_50, %c0_51, %c0_52, %c0_53] : memref<1x16x16x8xf32, #tpu.memory_space<vmem>>, vector<1x16x16x8xf32>
    tpu.vector_store %arg4[%c0_50, %c0_51, %c0_52, %c0_53], %36 {strides = array<i32>} : memref<1x16x16x8xf32, #tpu.memory_space<vmem>>, vector<1x16x16x8xf32>,
    return
  }
  func.func @transform_0(%arg0: i32, %arg1: i32) -> (i32, i32, i32, i32) {
    %c2_i32 = arith.constant 2 : i32
    %0 = arith.muli %arg0, %c2_i32 : i32
    %1 = arith.addi %0, %arg1 : i32
    %c0_i32 = arith.constant 0 : i32
    %c0_i32_0 = arith.constant 0 : i32
    %c0_i32_1 = arith.constant 0 : i32
    %c0_i32_2 = arith.constant 0 : i32
    return %1, %c0_i32, %c0_i32_0, %c0_i32_1 : i32, i32, i32, i32
  }
  func.func @transform_1(%arg0: i32, %arg1: i32) -> (i32, i32, i32) {
    %c0_i32 = arith.constant 0 : i32
    %c0_i32_0 = arith.constant 0 : i32
    %c0_i32_1 = arith.constant 0 : i32
    return %arg0, %c0_i32, %c0_i32_0 : i32, i32, i32
  }
  func.func @transform_2(%arg0: i32, %arg1: i32) -> (i32, i32, i32, i32) {
    %c2_i32 = arith.constant 2 : i32
    %0 = arith.muli %arg0, %c2_i32 : i32
    %1 = arith.addi %0, %arg1 : i32
    %c0_i32 = arith.constant 0 : i32
    %c0_i32_0 = arith.constant 0 : i32
    %c0_i32_1 = arith.constant 0 : i32
    %c0_i32_2 = arith.constant 0 : i32
    return %1, %c0_i32, %c0_i32_0, %c0_i32_1 : i32, i32, i32, i32
  }
}

</mosaic_0001>

<llo_original>
// kernel: conv3x3_parallel_pallas.1
$region0: #{conv3x3_parallel_pallas.1}
  #allocation0 [shape = 'u32[]', space=smem, size = 0x4, offset = 0x4, fixed_abs, tag = 'smem constant byte address 0x4 - core index']
  #allocation1 [shape = 'u32[72,128]{1,0:T(1,128)}', space=vmem, size = 0x9000, scoped, tag = 'internal scratch']
  #allocation2 [shape = 'f32[18,18,4]{2,1,0:T(8,128)}', space=vmem, size = 0x36000, scoped, tag = 'scratch operand']
  #allocation3 [shape = 'f32[256,36]{1,0:T(8,128)}', space=vmem, size = 0x20000, scoped, tag = 'scratch operand']
  %s0 = inlined_call_operand.vmem [shape: f32[4,16,16,4], index: 0, kind: input, shape index: {}]
  %s1 = inlined_call_operand.vmem [shape: f32[2,36,8], index: 1, kind: input, shape index: {}]
  %s2 = inlined_call_operand.vmem [shape: f32[4,16,16,8], index: 2, kind: output, shape index: {}]
  %s3 = sld [smem:[#allocation0]]
  $region41: #{conv3x3_parallel_pallas.1} parent=0
    _
  %s5 = ssub.s32 1, %s3
  %s6 = scalar_select 0, %s5, %s3
  loop: start=0, step=1, limit=6
  $region2: #{conv3x3_parallel_pallas.1} parent=0 // loop_pre_header
    _
  $region3: #{conv3x3_parallel_pallas.1} parent=0 // loop_header
    %s8 = sphi 0, %s12
    %p9 = scmp.ge.s32.totalorder %s8, 6
    %s15 = sphi 0, %s27
    %s16 = sphi 0, %s23
    %s17 = sphi 0, %s15
    %s18 = sphi 0, %s16
    %s19 = sphi 0, %s17
    %s20 = sphi 0, %s18
    %s34 = sphi 0, %s36
    %s37 = sphi 0, %s34
    %s38 = sphi 0, %s37
    %s54 = sphi 0, %s38
    %s60 = sphi 0, %s62
    %s63 = sphi 0, %s60
    %s64 = sphi 0, %s63
    %s80 = sphi 0, %s64
    %s90 = sphi 0, %s92
    %s93 = sphi 0, %s90
    %s94 = sphi 0, %s93
    %s110 = sphi 0, %s94
  $region4: #{conv3x3_parallel_pallas.1} parent=0 // loop_header_branch
    %11 = sbr.rel (%p9) target = $region8
  $region5: #{conv3x3_parallel_pallas.1} parent=0 // loop_body
    %s13 = ssub.s32 %s8, 1
    %s14 = ssub.s32 %s8, 2
    %s21 = sadd.s32 1, %s16
    %p22 = scmp.ge.s32.totalorder %s21, 2
    %s23 = scalar_select %p22, 0, %s21
    %s24 = sadd.s32 1, %s15
    %s25 = scalar_select %p22, %s24, %s15
    %p26 = scmp.ge.s32.totalorder %s25, 2
    %s27 = scalar_select %p26, 0, %s25
    %s28 = smul.u32 %s15, 2
    %s29 = sadd.s32 %s28, %s16
    %s30 = smul.u32 %s27, 2
    %s31 = sadd.s32 %s30, %s23
    %s32 = ssub.s32 %s29, %s31
    %p33 = scmp.eq.s32.totalorder %s32, 0
    %s35 = sadd.s32 %s34, 1
    %s36 = scalar_select %p33, %s34, %s35
    %p39 = pneg %p33
    %p40 = scmp.eq.s32.totalorder %s8, 3
    %p41 = por %p39, %p40
    %p42 = scmp.ne.s32.totalorder %s34, %s37
    %p43 = scmp.eq.s32.totalorder %s8, 0
    %p44 = por %p42, %p43
    %p45 = scmp.ne.s32.totalorder %s34, %s37
    %p46 = scmp.eq.s32.totalorder %s13, 3
    %p47 = por %p45, %p46
    %p48 = scmp.ne.s32.totalorder %s37, %s38
    %p49 = scmp.eq.s32.totalorder %s13, 0
    %p50 = por %p48, %p49
    %p51 = scmp.ne.s32.totalorder %s37, %s38
    %p52 = scmp.eq.s32.totalorder %s14, 3
    %p53 = por %p51, %p52
    %p55 = scmp.ne.s32.totalorder %s38, %s54
    %p56 = scmp.eq.s32.totalorder %s14, 0
    %p57 = por %p55, %p56
    %s58 = ssub.s32 %s15, %s27
    %p59 = scmp.eq.s32.totalorder %s58, 0
    %s61 = sadd.s32 %s60, 1
    %s62 = scalar_select %p59, %s60, %s61
    %p65 = pneg %p59
    %p66 = scmp.eq.s32.totalorder %s8, 3
    %p67 = por %p65, %p66
    %p68 = scmp.ne.s32.totalorder %s60, %s63
    %p69 = scmp.eq.s32.totalorder %s8, 0
    %p70 = por %p68, %p69
    %p71 = scmp.ne.s32.totalorder %s60, %s63
    %p72 = scmp.eq.s32.totalorder %s13, 3
    %p73 = por %p71, %p72
    %p74 = scmp.ne.s32.totalorder %s63, %s64
    %p75 = scmp.eq.s32.totalorder %s13, 0
    %p76 = por %p74, %p75
    %p77 = scmp.ne.s32.totalorder %s63, %s64
    %p78 = scmp.eq.s32.totalorder %s14, 3
    %p79 = por %p77, %p78
    %p81 = scmp.ne.s32.totalorder %s64, %s80
    %p82 = scmp.eq.s32.totalorder %s14, 0
    %p83 = por %p81, %p82
    %s84 = smul.u32 %s15, 2
    %s85 = sadd.s32 %s84, %s16
    %s86 = smul.u32 %s27, 2
    %s87 = sadd.s32 %s86, %s23
    %s88 = ssub.s32 %s85, %s87
    %p89 = scmp.eq.s32.totalorder %s88, 0
    %s91 = sadd.s32 %s90, 1
    %s92 = scalar_select %p89, %s90, %s91
    %p95 = pneg %p89
    %p96 = scmp.eq.s32.totalorder %s8, 3
    %p97 = por %p95, %p96
    %p98 = scmp.ne.s32.totalorder %s90, %s93
    %p99 = scmp.eq.s32.totalorder %s8, 0
    %p100 = por %p98, %p99
    %p101 = scmp.ne.s32.totalorder %s90, %s93
    %p102 = scmp.eq.s32.totalorder %s13, 3
    %p103 = por %p101, %p102
    %p104 = scmp.ne.s32.totalorder %s93, %s94
    %p105 = scmp.eq.s32.totalorder %s13, 0
    %p106 = por %p104, %p105
    %p107 = scmp.ne.s32.totalorder %s93, %s94
    %p108 = scmp.eq.s32.totalorder %s14, 3
    %p109 = por %p107, %p108
    %p111 = scmp.ne.s32.totalorder %s94, %s110
    %p112 = scmp.eq.s32.totalorder %s14, 0
    %p113 = por %p111, %p112
    %p114 = scmp.le.s32.totalorder 1, %s8
    %p115 = scmp.lt.s32.totalorder %s8, 5
    %p116 = pnand %p114, %p115
    %p117 = pneg %p116
    // Predicated region
    $region9: #{conv3x3_parallel_pallas.1} parent=5 // pred_check
      _
    $region10: #{conv3x3_parallel_pallas.1} parent=5 // pred_check_branch
      %119 = sbr.rel (%p116) target = $region12
    $region11: #{conv3x3_parallel_pallas.1} parent=5 // pred_region
      %s120 = ssub.s32 %s8, 1
    $region12: #{conv3x3_parallel_pallas.1} parent=5 // pred_fallthru
      _
    %p121 = scmp.lt.s32.totalorder %s8, 4
    // Predicated region
    $region13: #{conv3x3_parallel_pallas.1} parent=5 // pred_check
      %p122 = pneg %p121
    $region14: #{conv3x3_parallel_pallas.1} parent=5 // pred_check_branch
      %124 = sbr.rel (%p122) target = $region16
    $region15: #{conv3x3_parallel_pallas.1} parent=5 // pred_region
      // Predicated region
      $region17: #{conv3x3_parallel_pallas.1} parent=15 // pred_check
        %p125 = pneg %p44
      $region18: #{conv3x3_parallel_pallas.1} parent=15 // pred_check_branch
        %127 = sbr.rel (%p125) target = $region20
      $region19: #{conv3x3_parallel_pallas.1} parent=15 // pred_region
        %s128 = smul.u32 %s15, 2
        %s129 = sadd.s32 %s128, %s16
        %p130 = scmp.lt.s32.totalorder %s129, 3
        %s131 = scalar_select %p130, %s129, 3
        %s132 = smul.addr %s131, 32
        %s133 = smul.addr %s132, 8
        %s134 = scalar_lea.vmem %s0, %s133
        %s135 = smul.u32 %s15, 2
        %s136 = sadd.s32 %s135, %s16
      $region20: #{conv3x3_parallel_pallas.1} parent=15 // pred_fallthru
        _
      // Predicated region
      $region21: #{conv3x3_parallel_pallas.1} parent=15 // pred_check
        %p137 = pneg %p70
      $region22: #{conv3x3_parallel_pallas.1} parent=15 // pred_check_branch
        %139 = sbr.rel (%p137) target = $region24
      $region23: #{conv3x3_parallel_pallas.1} parent=15 // pred_region
        %p140 = scmp.lt.s32.totalorder %s15, 1
        %s141 = scalar_select %p140, %s15, 1
        %s142 = smul.addr %s141, 5
        %s143 = smul.addr %s142, 8
        %s144 = scalar_lea.vmem %s1, %s143
      $region24: #{conv3x3_parallel_pallas.1} parent=15 // pred_fallthru
        _
    $region16: #{conv3x3_parallel_pallas.1} parent=5 // pred_fallthru
      _
    %p145 = scmp.le.s32.totalorder 1, %s8
    %p146 = scmp.lt.s32.totalorder %s8, 5
    %p147 = pnand %p145, %p146
    %p148 = pneg %p147
    // Predicated region
    $region25: #{conv3x3_parallel_pallas.1} parent=5 // pred_check
      _
    $region26: #{conv3x3_parallel_pallas.1} parent=5 // pred_check_branch
      %150 = sbr.rel (%p147) target = $region28
    $region27: #{conv3x3_parallel_pallas.1} parent=5 // pred_region
      %s151 = ssub.s32 %s8, 1
      %s152 = smul.u32 %s17, 2
      %s153 = sadd.s32 %s152, %s18
      %p154 = scmp.lt.s32.totalorder %s153, 3
      %s155 = scalar_select %p154, %s153, 3
      %s156 = smul.addr %s155, 32
      %s157 = smul.addr %s156, 8
      %s158 = scalar_lea.vmem %s0, %s157
      %p159 = pneg %p50
      %p160 = pneg %p47
      %p161 = scmp.lt.s32.totalorder %s17, 1
      %s162 = scalar_select %p161, %s17, 1
      %s163 = smul.addr %s162, 5
      %s164 = smul.addr %s163, 8
      %s165 = scalar_lea.vmem %s1, %s164
      %p166 = pneg %p76
      %p167 = pneg %p73
      %p168 = pneg %p106
      %p169 = pneg %p103
      %s170 = smul.u32 %s17, 2
      %s171 = sadd.s32 %s170, %s18
      %p172 = scmp.lt.s32.totalorder %s171, 3
      %s173 = scalar_select %p172, %s171, 3
      %s174 = smul.addr %s173, 32
      %s175 = smul.addr %s174, 8
      %s176 = scalar_lea.vmem %s2, %s175
      %s177 = smul.u32 %s17, 2
      %s178 = sadd.s32 %s177, %s18
      %p179 = scmp.lt.s32.totalorder %s178, 3
      %s180 = scalar_select %p179, %s178, 3
      %s181 = smul.addr %s180, 32
      %s182 = smul.addr %s181, 8
      %s183 = scalar_lea.vmem %s0, %s182
      %s184 = smul.u32 %s17, 2
      %s185 = sadd.s32 %s184, %s18
      %p186 = scmp.lt.s32.totalorder %s17, 1
      %s187 = scalar_select %p186, %s17, 1
      %s188 = smul.addr %s187, 5
      %s189 = smul.addr %s188, 8
      %s190 = scalar_lea.vmem %s1, %s189
      %s191 = smul.u32 %s17, 2
      %s192 = sadd.s32 %s191, %s18
      %p193 = scmp.lt.s32.totalorder %s192, 3
      %s194 = scalar_select %p193, %s192, 3
      %s195 = smul.addr %s194, 32
      %s196 = smul.addr %s195, 8
      %s197 = scalar_lea.vmem %s2, %s196
      %s198 = smul.u32 %s17, 2
      %s199 = sadd.s32 %s198, %s18
      %vm200 = vcmask 31744
      %201 = vst.msk [vmem:[#allocation2] sm:$0xff] %vm200, 0.0
      %202 = vst.msk [vmem:[#allocation2 + $0x8] sm:$0xff] %vm200, 0.0
      %vm203 = vcmask 25600
      %204 = vst.msk [vmem:[#allocation2 + $0x10] sm:$0x3] %vm203, 0.0
      %205 = vst.msk [vmem:[#allocation2 + $0x18] sm:$0xff] %vm200, 0.0
      %206 = vst.msk [vmem:[#allocation2 + $0x20] sm:$0xff] %vm200, 0.0
      %207 = vst.msk [vmem:[#allocation2 + $0x28] sm:$0x3] %vm203, 0.0
      %208 = vst.msk [vmem:[#allocation2 + $0x30] sm:$0xff] %vm200, 0.0
      %209 = vst.msk [vmem:[#allocation2 + $0x38] sm:$0xff] %vm200, 0.0
      %210 = vst.msk [vmem:[#allocation2 + $0x40] sm:$0x3] %vm203, 0.0
      %211 = vst.msk [vmem:[#allocation2 + $0x48] sm:$0xff] %vm200, 0.0
      %212 = vst.msk [vmem:[#allocation2 + $0x50] sm:$0xff] %vm200, 0.0
      %213 = vst.msk [vmem:[#allocation2 + $0x58] sm:$0x3] %vm203, 0.0
      %214 = vst.msk [vmem:[#allocation2 + $0x60] sm:$0xff] %vm200, 0.0
      %215 = vst.msk [vmem:[#allocation2 + $0x68] sm:$0xff] %vm200, 0.0
      %216 = vst.msk [vmem:[#allocation2 + $0x70] sm:$0x3] %vm203, 0.0
      %217 = vst.msk [vmem:[#allocation2 + $0x78] sm:$0xff] %vm200, 0.0
      %218 = vst.msk [vmem:[#allocation2 + $0x80] sm:$0xff] %vm200, 0.0
      %219 = vst.msk [vmem:[#allocation2 + $0x88] sm:$0x3] %vm203, 0.0
      %220 = vst.msk [vmem:[#allocation2 + $0x90] sm:$0xff] %vm200, 0.0
      %221 = vst.msk [vmem:[#allocation2 + $0x98] sm:$0xff] %vm200, 0.0
      %222 = vst.msk [vmem:[#allocation2 + $0xa0] sm:$0x3] %vm203, 0.0
      %223 = vst.msk [vmem:[#allocation2 + $0xa8] sm:$0xff] %vm200, 0.0
      %224 = vst.msk [vmem:[#allocation2 + $0xb0] sm:$0xff] %vm200, 0.0
      %225 = vst.msk [vmem:[#allocation2 + $0xb8] sm:$0x3] %vm203, 0.0
      %226 = vst.msk [vmem:[#allocation2 + $0xc0] sm:$0xff] %vm200, 0.0
      %227 = vst.msk [vmem:[#allocation2 + $0xc8] sm:$0xff] %vm200, 0.0
      %228 = vst.msk [vmem:[#allocation2 + $0xd0] sm:$0x3] %vm203, 0.0
      %229 = vst.msk [vmem:[#allocation2 + $0xd8] sm:$0xff] %vm200, 0.0
      %230 = vst.msk [vmem:[#allocation2 + $0xe0] sm:$0xff] %vm200, 0.0
      %231 = vst.msk [vmem:[#allocation2 + $0xe8] sm:$0x3] %vm203, 0.0
      %232 = vst.msk [vmem:[#allocation2 + $0xf0] sm:$0xff] %vm200, 0.0
      %233 = vst.msk [vmem:[#allocation2 + $0xf8] sm:$0xff] %vm200, 0.0
      %234 = vst.msk [vmem:[#allocation2 + $0x100] sm:$0x3] %vm203, 0.0
      %235 = vst.msk [vmem:[#allocation2 + $0x108] sm:$0xff] %vm200, 0.0
      %236 = vst.msk [vmem:[#allocation2 + $0x110] sm:$0xff] %vm200, 0.0
      %237 = vst.msk [vmem:[#allocation2 + $0x118] sm:$0x3] %vm203, 0.0
      %238 = vst.msk [vmem:[#allocation2 + $0x120] sm:$0xff] %vm200, 0.0
      %239 = vst.msk [vmem:[#allocation2 + $0x128] sm:$0xff] %vm200, 0.0
      %240 = vst.msk [vmem:[#allocation2 + $0x130] sm:$0x3] %vm203, 0.0
      %241 = vst.msk [vmem:[#allocation2 + $0x138] sm:$0xff] %vm200, 0.0
      %242 = vst.msk [vmem:[#allocation2 + $0x140] sm:$0xff] %vm200, 0.0
      %243 = vst.msk [vmem:[#allocation2 + $0x148] sm:$0x3] %vm203, 0.0
      %244 = vst.msk [vmem:[#allocation2 + $0x150] sm:$0xff] %vm200, 0.0
      %245 = vst.msk [vmem:[#allocation2 + $0x158] sm:$0xff] %vm200, 0.0
      %246 = vst.msk [vmem:[#allocation2 + $0x160] sm:$0x3] %vm203, 0.0
      %247 = vst.msk [vmem:[#allocation2 + $0x168] sm:$0xff] %vm200, 0.0
      %248 = vst.msk [vmem:[#allocation2 + $0x170] sm:$0xff] %vm200, 0.0
      %249 = vst.msk [vmem:[#allocation2 + $0x178] sm:$0x3] %vm203, 0.0
      %250 = vst.msk [vmem:[#allocation2 + $0x180] sm:$0xff] %vm200, 0.0
      %251 = vst.msk [vmem:[#allocation2 + $0x188] sm:$0xff] %vm200, 0.0
      %252 = vst.msk [vmem:[#allocation2 + $0x190] sm:$0x3] %vm203, 0.0
      %253 = vst.msk [vmem:[#allocation2 + $0x198] sm:$0xff] %vm200, 0.0
      %254 = vst.msk [vmem:[#allocation2 + $0x1a0] sm:$0xff] %vm200, 0.0
      %255 = vst.msk [vmem:[#allocation2 + $0x1a8] sm:$0x3] %vm203, 0.0
      %v256 = vld [vmem:[%s183] sm:$0xff]
      %v257 = vld [vmem:[%s183 + $0x8] sm:$0xff]
      %v258 = vld [vmem:[%s183 + $0x10] sm:$0xff]
      %v259 = vld [vmem:[%s183 + $0x18] sm:$0xff]
      %v260 = vld [vmem:[%s183 + $0x20] sm:$0xff]
      %v261 = vld [vmem:[%s183 + $0x28] sm:$0xff]
      %v262 = vld [vmem:[%s183 + $0x30] sm:$0xff]
      %v263 = vld [vmem:[%s183 + $0x38] sm:$0xff]
      %v264 = vld [vmem:[%s183 + $0x40] sm:$0xff]
      %v265 = vld [vmem:[%s183 + $0x48] sm:$0xff]
      %v266 = vld [vmem:[%s183 + $0x50] sm:$0xff]
      %v267 = vld [vmem:[%s183 + $0x58] sm:$0xff]
      %v268 = vld [vmem:[%s183 + $0x60] sm:$0xff]
      %v269 = vld [vmem:[%s183 + $0x68] sm:$0xff]
      %v270 = vld [vmem:[%s183 + $0x70] sm:$0xff]
      %v271 = vld [vmem:[%s183 + $0x78] sm:$0xff]
      %v272 = vld [vmem:[%s183 + $0x80] sm:$0xff]
      %v273 = vld [vmem:[%s183 + $0x88] sm:$0xff]
      %v274 = vld [vmem:[%s183 + $0x90] sm:$0xff]
      %v275 = vld [vmem:[%s183 + $0x98] sm:$0xff]
      %v276 = vld [vmem:[%s183 + $0xa0] sm:$0xff]
      %v277 = vld [vmem:[%s183 + $0xa8] sm:$0xff]
      %v278 = vld [vmem:[%s183 + $0xb0] sm:$0xff]
      %v279 = vld [vmem:[%s183 + $0xb8] sm:$0xff]
      %v280 = vld [vmem:[%s183 + $0xc0] sm:$0xff]
      %v281 = vld [vmem:[%s183 + $0xc8] sm:$0xff]
      %v282 = vld [vmem:[%s183 + $0xd0] sm:$0xff]
      %v283 = vld [vmem:[%s183 + $0xd8] sm:$0xff]
      %v284 = vld [vmem:[%s183 + $0xe0] sm:$0xff]
      %v285 = vld [vmem:[%s183 + $0xe8] sm:$0xff]
      %v286 = vld [vmem:[%s183 + $0xf0] sm:$0xff]
      %v287 = vld [vmem:[%s183 + $0xf8] sm:$0xff]
      %s288 = scalar_lea.vmem [#allocation2], 24
      %289 = vst.msk [vmem:[%s288 + $0x1] sm:$0xff] %vm200, %v256
      %290 = vst.msk [vmem:[%s288 + $0x9] sm:$0xff] %vm200, %v257
      %291 = vst.msk [vmem:[%s288 + $0x19] sm:$0xff] %vm200, %v258
      %292 = vst.msk [vmem:[%s288 + $0x21] sm:$0xff] %vm200, %v259
      %293 = vst.msk [vmem:[%s288 + $0x31] sm:$0xff] %vm200, %v260
      %294 = vst.msk [vmem:[%s288 + $0x39] sm:$0xff] %vm200, %v261
      %295 = vst.msk [vmem:[%s288 + $0x49] sm:$0xff] %vm200, %v262
      %296 = vst.msk [vmem:[%s288 + $0x51] sm:$0xff] %vm200, %v263
      %297 = vst.msk [vmem:[%s288 + $0x61] sm:$0xff] %vm200, %v264
      %298 = vst.msk [vmem:[%s288 + $0x69] sm:$0xff] %vm200, %v265
      %299 = vst.msk [vmem:[%s288 + $0x79] sm:$0xff] %vm200, %v266
      %300 = vst.msk [vmem:[%s288 + $0x81] sm:$0xff] %vm200, %v267
      %301 = vst.msk [vmem:[%s288 + $0x91] sm:$0xff] %vm200, %v268
      %302 = vst.msk [vmem:[%s288 + $0x99] sm:$0xff] %vm200, %v269
      %303 = vst.msk [vmem:[%s288 + $0xa9] sm:$0xff] %vm200, %v270
      %304 = vst.msk [vmem:[%s288 + $0xb1] sm:$0xff] %vm200, %v271
      %305 = vst.msk [vmem:[%s288 + $0xc1] sm:$0xff] %vm200, %v272
      %306 = vst.msk [vmem:[%s288 + $0xc9] sm:$0xff] %vm200, %v273
      %307 = vst.msk [vmem:[%s288 + $0xd9] sm:$0xff] %vm200, %v274
      %308 = vst.msk [vmem:[%s288 + $0xe1] sm:$0xff] %vm200, %v275
      %309 = vst.msk [vmem:[%s288 + $0xf1] sm:$0xff] %vm200, %v276
      %310 = vst.msk [vmem:[%s288 + $0xf9] sm:$0xff] %vm200, %v277
      %311 = vst.msk [vmem:[%s288 + $0x109] sm:$0xff] %vm200, %v278
      %312 = vst.msk [vmem:[%s288 + $0x111] sm:$0xff] %vm200, %v279
      %313 = vst.msk [vmem:[%s288 + $0x121] sm:$0xff] %vm200, %v280
      %314 = vst.msk [vmem:[%s288 + $0x129] sm:$0xff] %vm200, %v281
      %315 = vst.msk [vmem:[%s288 + $0x139] sm:$0xff] %vm200, %v282
      %316 = vst.msk [vmem:[%s288 + $0x141] sm:$0xff] %vm200, %v283
      %317 = vst.msk [vmem:[%s288 + $0x151] sm:$0xff] %vm200, %v284
      %318 = vst.msk [vmem:[%s288 + $0x159] sm:$0xff] %vm200, %v285
      %319 = vst.msk [vmem:[%s288 + $0x169] sm:$0xff] %vm200, %v286
      %320 = vst.msk [vmem:[%s288 + $0x171] sm:$0xff] %vm200, %v287
      %v321 = vld [vmem:[#allocation2] sm:$0xff]
      %v322 = vld [vmem:[#allocation2 + $0x8] sm:$0xff]
      %v323 = vld [vmem:[#allocation2 + $0x18] sm:$0xff]
      %v324 = vld [vmem:[#allocation2 + $0x20] sm:$0xff]
      %v325 = vld [vmem:[#allocation2 + $0x30] sm:$0xff]
      %v326 = vld [vmem:[#allocation2 + $0x38] sm:$0xff]
      %v327 = vld [vmem:[#allocation2 + $0x48] sm:$0xff]
      %v328 = vld [vmem:[#allocation2 + $0x50] sm:$0xff]
      %v329 = vld [vmem:[#allocation2 + $0x60] sm:$0xff]
      %v330 = vld [vmem:[#allocation2 + $0x68] sm:$0xff]
      %v331 = vld [vmem:[#allocation2 + $0x78] sm:$0xff]
      %v332 = vld [vmem:[#allocation2 + $0x80] sm:$0xff]
      %v333 = vld [vmem:[#allocation2 + $0x90] sm:$0xff]
      %v334 = vld [vmem:[#allocation2 + $0x98] sm:$0xff]
      %v335 = vld [vmem:[#allocation2 + $0xa8] sm:$0xff]
      %v336 = vld [vmem:[#allocation2 + $0xb0] sm:$0xff]
      %v337 = vld [vmem:[#allocation2 + $0xc0] sm:$0xff]
      %v338 = vld [vmem:[#allocation2 + $0xc8] sm:$0xff]
      %v339 = vld [vmem:[#allocation2 + $0xd8] sm:$0xff]
      %v340 = vld [vmem:[#allocation2 + $0xe0] sm:$0xff]
      %v341 = vld [vmem:[#allocation2 + $0xf0] sm:$0xff]
      %v342 = vld [vmem:[#allocation2 + $0xf8] sm:$0xff]
      %v343 = vld [vmem:[#allocation2 + $0x108] sm:$0xff]
      %v344 = vld [vmem:[#allocation2 + $0x110] sm:$0xff]
      %v345 = vld [vmem:[#allocation2 + $0x120] sm:$0xff]
      %v346 = vld [vmem:[#allocation2 + $0x128] sm:$0xff]
      %v347 = vld [vmem:[#allocation2 + $0x138] sm:$0xff]
      %v348 = vld [vmem:[#allocation2 + $0x140] sm:$0xff]
      %v349 = vld [vmem:[#allocation2 + $0x150] sm:$0xff]
      %v350 = vld [vmem:[#allocation2 + $0x158] sm:$0xff]
      %v351 = vld [vmem:[#allocation2 + $0x168] sm:$0xff]
      %v352 = vld [vmem:[#allocation2 + $0x170] sm:$0xff]
      %353 = vst.msk [vmem:[#allocation3] sm:$0xff] %vm200, %v321
      %354 = vst.msk [vmem:[#allocation3 + $0x8] sm:$0xff] %vm200, %v322
      %355 = vst.msk [vmem:[#allocation3 + $0x10] sm:$0xff] %vm200, %v323
      %356 = vst.msk [vmem:[#allocation3 + $0x18] sm:$0xff] %vm200, %v324
      %357 = vst.msk [vmem:[#allocation3 + $0x20] sm:$0xff] %vm200, %v325
      %358 = vst.msk [vmem:[#allocation3 + $0x28] sm:$0xff] %vm200, %v326
      %359 = vst.msk [vmem:[#allocation3 + $0x30] sm:$0xff] %vm200, %v327
      %360 = vst.msk [vmem:[#allocation3 + $0x38] sm:$0xff] %vm200, %v328
      %361 = vst.msk [vmem:[#allocation3 + $0x40] sm:$0xff] %vm200, %v329
      %362 = vst.msk [vmem:[#allocation3 + $0x48] sm:$0xff] %vm200, %v330
      %363 = vst.msk [vmem:[#allocation3 + $0x50] sm:$0xff] %vm200, %v331
      %364 = vst.msk [vmem:[#allocation3 + $0x58] sm:$0xff] %vm200, %v332
      %365 = vst.msk [vmem:[#allocation3 + $0x60] sm:$0xff] %vm200, %v333
      %366 = vst.msk [vmem:[#allocation3 + $0x68] sm:$0xff] %vm200, %v334
      %367 = vst.msk [vmem:[#allocation3 + $0x70] sm:$0xff] %vm200, %v335
      %368 = vst.msk [vmem:[#allocation3 + $0x78] sm:$0xff] %vm200, %v336
      %369 = vst.msk [vmem:[#allocation3 + $0x80] sm:$0xff] %vm200, %v337
      %370 = vst.msk [vmem:[#allocation3 + $0x88] sm:$0xff] %vm200, %v338
      %371 = vst.msk [vmem:[#allocation3 + $0x90] sm:$0xff] %vm200, %v339
      %372 = vst.msk [vmem:[#allocation3 + $0x98] sm:$0xff] %vm200, %v340
      %373 = vst.msk [vmem:[#allocation3 + $0xa0] sm:$0xff] %vm200, %v341
      %374 = vst.msk [vmem:[#allocation3 + $0xa8] sm:$0xff] %vm200, %v342
      %375 = vst.msk [vmem:[#allocation3 + $0xb0] sm:$0xff] %vm200, %v343
      %376 = vst.msk [vmem:[#allocation3 + $0xb8] sm:$0xff] %vm200, %v344
      %377 = vst.msk [vmem:[#allocation3 + $0xc0] sm:$0xff] %vm200, %v345
      %378 = vst.msk [vmem:[#allocation3 + $0xc8] sm:$0xff] %vm200, %v346
      %379 = vst.msk [vmem:[#allocation3 + $0xd0] sm:$0xff] %vm200, %v347
      %380 = vst.msk [vmem:[#allocation3 + $0xd8] sm:$0xff] %vm200, %v348
      %381 = vst.msk [vmem:[#allocation3 + $0xe0] sm:$0xff] %vm200, %v349
      %382 = vst.msk [vmem:[#allocation3 + $0xe8] sm:$0xff] %vm200, %v350
      %383 = vst.msk [vmem:[#allocation3 + $0xf0] sm:$0xff] %vm200, %v351
      %384 = vst.msk [vmem:[#allocation3 + $0xf8] sm:$0xff] %vm200, %v352
      %v385 = vld [vmem:[#allocation2 + $0x1] sm:$0xff]
      %v386 = vld [vmem:[#allocation2 + $0x9] sm:$0xff]
      %v387 = vld [vmem:[#allocation2 + $0x19] sm:$0xff]
      %v388 = vld [vmem:[#allocation2 + $0x21] sm:$0xff]
      %v389 = vld [vmem:[#allocation2 + $0x31] sm:$0xff]
      %v390 = vld [vmem:[#allocation2 + $0x39] sm:$0xff]
      %v391 = vld [vmem:[#allocation2 + $0x49] sm:$0xff]
      %v392 = vld [vmem:[#allocation2 + $0x51] sm:$0xff]
      %v393 = vld [vmem:[#allocation2 + $0x61] sm:$0xff]
      %v394 = vld [vmem:[#allocation2 + $0x69] sm:$0xff]
      %v395 = vld [vmem:[#allocation2 + $0x79] sm:$0xff]
      %v396 = vld [vmem:[#allocation2 + $0x81] sm:$0xff]
      %v397 = vld [vmem:[#allocation2 + $0x91] sm:$0xff]
      %v398 = vld [vmem:[#allocation2 + $0x99] sm:$0xff]
      %v399 = vld [vmem:[#allocation2 + $0xa9] sm:$0xff]
      %v400 = vld [vmem:[#allocation2 + $0xb1] sm:$0xff]
      %v401 = vld [vmem:[#allocation2 + $0xc1] sm:$0xff]
      %v402 = vld [vmem:[#allocation2 + $0xc9] sm:$0xff]
      %v403 = vld [vmem:[#allocation2 + $0xd9] sm:$0xff]
      %v404 = vld [vmem:[#allocation2 + $0xe1] sm:$0xff]
      %v405 = vld [vmem:[#allocation2 + $0xf1] sm:$0xff]
      %v406 = vld [vmem:[#allocation2 + $0xf9] sm:$0xff]
      %v407 = vld [vmem:[#allocation2 + $0x109] sm:$0xff]
      %v408 = vld [vmem:[#allocation2 + $0x111] sm:$0xff]
      %v409 = vld [vmem:[#allocation2 + $0x121] sm:$0xff]
      %v410 = vld [vmem:[#allocation2 + $0x129] sm:$0xff]
      %v411 = vld [vmem:[#allocation2 + $0x139] sm:$0xff]
      %v412 = vld [vmem:[#allocation2 + $0x141] sm:$0xff]
      %v413 = vld [vmem:[#allocation2 + $0x151] sm:$0xff]
      %v414 = vld [vmem:[#allocation2 + $0x159] sm:$0xff]
      %v415 = vld [vmem:[#allocation2 + $0x169] sm:$0xff]
      %v416 = vld [vmem:[#allocation2 + $0x171] sm:$0xff]
      %449 = vrot.lane.b32.xlu0 %v385, 4
      %v450 = vpop.permute.xlu0 %449
      %451 = vrot.lane.b32.xlu0 %v386, 4
      %v452 = vpop.permute.xlu0 %451
      %453 = vrot.lane.b32.xlu0 %v387, 4
      %v454 = vpop.permute.xlu0 %453
      %455 = vrot.lane.b32.xlu0 %v388, 4
      %v456 = vpop.permute.xlu0 %455
      %457 = vrot.lane.b32.xlu0 %v389, 4
      %v458 = vpop.permute.xlu0 %457
      %459 = vrot.lane.b32.xlu0 %v390, 4
      %v460 = vpop.permute.xlu0 %459
      %461 = vrot.lane.b32.xlu0 %v391, 4
      %v462 = vpop.permute.xlu0 %461
      %463 = vrot.lane.b32.xlu0 %v392, 4
      %v464 = vpop.permute.xlu0 %463
      %465 = vrot.lane.b32.xlu0 %v393, 4
      %v466 = vpop.permute.xlu0 %465
      %467 = vrot.lane.b32.xlu0 %v394, 4
      %v468 = vpop.permute.xlu0 %467
      %469 = vrot.lane.b32.xlu0 %v395, 4
      %v470 = vpop.permute.xlu0 %469
      %471 = vrot.lane.b32.xlu0 %v396, 4
      %v472 = vpop.permute.xlu0 %471
      %473 = vrot.lane.b32.xlu0 %v397, 4
      %v474 = vpop.permute.xlu0 %473
      %475 = vrot.lane.b32.xlu0 %v398, 4
      %v476 = vpop.permute.xlu0 %475
      %477 = vrot.lane.b32.xlu0 %v399, 4
      %v478 = vpop.permute.xlu0 %477
      %479 = vrot.lane.b32.xlu0 %v400, 4
      %v480 = vpop.permute.xlu0 %479
      %481 = vrot.lane.b32.xlu0 %v401, 4
      %v482 = vpop.permute.xlu0 %481
      %483 = vrot.lane.b32.xlu0 %v402, 4
      %v484 = vpop.permute.xlu0 %483
      %485 = vrot.lane.b32.xlu0 %v403, 4
      %v486 = vpop.permute.xlu0 %485
      %487 = vrot.lane.b32.xlu0 %v404, 4
      %v488 = vpop.permute.xlu0 %487
      %489 = vrot.lane.b32.xlu0 %v405, 4
      %v490 = vpop.permute.xlu0 %489
      %491 = vrot.lane.b32.xlu0 %v406, 4
      %v492 = vpop.permute.xlu0 %491
      %493 = vrot.lane.b32.xlu0 %v407, 4
      %v494 = vpop.permute.xlu0 %493
      %495 = vrot.lane.b32.xlu0 %v408, 4
      %v496 = vpop.permute.xlu0 %495
      %497 = vrot.lane.b32.xlu0 %v409, 4
      %v498 = vpop.permute.xlu0 %497
      %499 = vrot.lane.b32.xlu0 %v410, 4
      %v500 = vpop.permute.xlu0 %499
      %501 = vrot.lane.b32.xlu0 %v411, 4
      %v502 = vpop.permute.xlu0 %501
      %503 = vrot.lane.b32.xlu0 %v412, 4
      %v504 = vpop.permute.xlu0 %503
      %505 = vrot.lane.b32.xlu0 %v413, 4
      %v506 = vpop.permute.xlu0 %505
      %507 = vrot.lane.b32.xlu0 %v414, 4
      %v508 = vpop.permute.xlu0 %507
      %509 = vrot.lane.b32.xlu0 %v415, 4
      %v510 = vpop.permute.xlu0 %509
      %511 = vrot.lane.b32.xlu0 %v416, 4
      %v512 = vpop.permute.xlu0 %511
      %vm545 = vcmask 64544
      %546 = vst.msk [vmem:[#allocation3] sm:$0xff] %vm545, %v450
      %547 = vst.msk [vmem:[#allocation3 + $0x8] sm:$0xff] %vm545, %v452
      %548 = vst.msk [vmem:[#allocation3 + $0x10] sm:$0xff] %vm545, %v454
      %549 = vst.msk [vmem:[#allocation3 + $0x18] sm:$0xff] %vm545, %v456
      %550 = vst.msk [vmem:[#allocation3 + $0x20] sm:$0xff] %vm545, %v458
      %551 = vst.msk [vmem:[#allocation3 + $0x28] sm:$0xff] %vm545, %v460
      %552 = vst.msk [vmem:[#allocation3 + $0x30] sm:$0xff] %vm545, %v462
      %553 = vst.msk [vmem:[#allocation3 + $0x38] sm:$0xff] %vm545, %v464
      %554 = vst.msk [vmem:[#allocation3 + $0x40] sm:$0xff] %vm545, %v466
      %555 = vst.msk [vmem:[#allocation3 + $0x48] sm:$0xff] %vm545, %v468
      %556 = vst.msk [vmem:[#allocation3 + $0x50] sm:$0xff] %vm545, %v470
      %557 = vst.msk [vmem:[#allocation3 + $0x58] sm:$0xff] %vm545, %v472
      %558 = vst.msk [vmem:[#allocation3 + $0x60] sm:$0xff] %vm545, %v474
      %559 = vst.msk [vmem:[#allocation3 + $0x68] sm:$0xff] %vm545, %v476
      %560 = vst.msk [vmem:[#allocation3 + $0x70] sm:$0xff] %vm545, %v478
      %561 = vst.msk [vmem:[#allocation3 + $0x78] sm:$0xff] %vm545, %v480
      %562 = vst.msk [vmem:[#allocation3 + $0x80] sm:$0xff] %vm545, %v482
      %563 = vst.msk [vmem:[#allocation3 + $0x88] sm:$0xff] %vm545, %v484
      %564 = vst.msk [vmem:[#allocation3 + $0x90] sm:$0xff] %vm545, %v486
      %565 = vst.msk [vmem:[#allocation3 + $0x98] sm:$0xff] %vm545, %v488
      %566 = vst.msk [vmem:[#allocation3 + $0xa0] sm:$0xff] %vm545, %v490
      %567 = vst.msk [vmem:[#allocation3 + $0xa8] sm:$0xff] %vm545, %v492
      %568 = vst.msk [vmem:[#allocation3 + $0xb0] sm:$0xff] %vm545, %v494
      %569 = vst.msk [vmem:[#allocation3 + $0xb8] sm:$0xff] %vm545, %v496
      %570 = vst.msk [vmem:[#allocation3 + $0xc0] sm:$0xff] %vm545, %v498
      %571 = vst.msk [vmem:[#allocation3 + $0xc8] sm:$0xff] %vm545, %v500
      %572 = vst.msk [vmem:[#allocation3 + $0xd0] sm:$0xff] %vm545, %v502
      %573 = vst.msk [vmem:[#allocation3 + $0xd8] sm:$0xff] %vm545, %v504
      %574 = vst.msk [vmem:[#allocation3 + $0xe0] sm:$0xff] %vm545, %v506
      %575 = vst.msk [vmem:[#allocation3 + $0xe8] sm:$0xff] %vm545, %v508
      %576 = vst.msk [vmem:[#allocation3 + $0xf0] sm:$0xff] %vm545, %v510
      %577 = vst.msk [vmem:[#allocation3 + $0xf8] sm:$0xff] %vm545, %v512
      %v578 = vld [vmem:[#allocation2 + $0x2] sm:$0xff]
      %v579 = vld [vmem:[#allocation2 + $0xa] sm:$0xff]
      %v580 = vld [vmem:[#allocation2 + $0x1a] sm:$0xff]
      %v581 = vld [vmem:[#allocation2 + $0x22] sm:$0xff]
      %v582 = vld [vmem:[#allocation2 + $0x32] sm:$0xff]
      %v583 = vld [vmem:[#allocation2 + $0x3a] sm:$0xff]
      %v584 = vld [vmem:[#allocation2 + $0x4a] sm:$0xff]
      %v585 = vld [vmem:[#allocation2 + $0x52] sm:$0xff]
      %v586 = vld [vmem:[#allocation2 + $0x62] sm:$0xff]
      %v587 = vld [vmem:[#allocation2 + $0x6a] sm:$0xff]
      %v588 = vld [vmem:[#allocation2 + $0x7a] sm:$0xff]
      %v589 = vld [vmem:[#allocation2 + $0x82] sm:$0xff]
      %v590 = vld [vmem:[#allocation2 + $0x92] sm:$0xff]
      %v591 = vld [vmem:[#allocation2 + $0x9a] sm:$0xff]
      %v592 = vld [vmem:[#allocation2 + $0xaa] sm:$0xff]
      %v593 = vld [vmem:[#allocation2 + $0xb2] sm:$0xff]
      %v594 = vld [vmem:[#allocation2 + $0xc2] sm:$0xff]
      %v595 = vld [vmem:[#allocation2 + $0xca] sm:$0xff]
      %v596 = vld [vmem:[#allocation2 + $0xda] sm:$0xff]
      %v597 = vld [vmem:[#allocation2 + $0xe2] sm:$0xff]
      %v598 = vld [vmem:[#allocation2 + $0xf2] sm:$0xff]
      %v599 = vld [vmem:[#allocation2 + $0xfa] sm:$0xff]
      %v600 = vld [vmem:[#allocation2 + $0x10a] sm:$0xff]
      %v601 = vld [vmem:[#allocation2 + $0x112] sm:$0xff]
      %v602 = vld [vmem:[#allocation2 + $0x122] sm:$0xff]
      %v603 = vld [vmem:[#allocation2 + $0x12a] sm:$0xff]
      %v604 = vld [vmem:[#allocation2 + $0x13a] sm:$0xff]
      %v605 = vld [vmem:[#allocation2 + $0x142] sm:$0xff]
      %v606 = vld [vmem:[#allocation2 + $0x152] sm:$0xff]
      %v607 = vld [vmem:[#allocation2 + $0x15a] sm:$0xff]
      %v608 = vld [vmem:[#allocation2 + $0x16a] sm:$0xff]
      %v609 = vld [vmem:[#allocation2 + $0x172] sm:$0xff]
      %642 = vrot.lane.b32.xlu0 %v578, 8
      %v643 = vpop.permute.xlu0 %642
      %644 = vrot.lane.b32.xlu0 %v579, 8
      %v645 = vpop.permute.xlu0 %644
      %646 = vrot.lane.b32.xlu0 %v580, 8
      %v647 = vpop.permute.xlu0 %646
      %648 = vrot.lane.b32.xlu0 %v581, 8
      %v649 = vpop.permute.xlu0 %648
      %650 = vrot.lane.b32.xlu0 %v582, 8
      %v651 = vpop.permute.xlu0 %650
      %652 = vrot.lane.b32.xlu0 %v583, 8
      %v653 = vpop.permute.xlu0 %652
      %654 = vrot.lane.b32.xlu0 %v584, 8
      %v655 = vpop.permute.xlu0 %654
      %656 = vrot.lane.b32.xlu0 %v585, 8
      %v657 = vpop.permute.xlu0 %656
      %658 = vrot.lane.b32.xlu0 %v586, 8
      %v659 = vpop.permute.xlu0 %658
      %660 = vrot.lane.b32.xlu0 %v587, 8
      %v661 = vpop.permute.xlu0 %660
      %662 = vrot.lane.b32.xlu0 %v588, 8
      %v663 = vpop.permute.xlu0 %662
      %664 = vrot.lane.b32.xlu0 %v589, 8
      %v665 = vpop.permute.xlu0 %664
      %666 = vrot.lane.b32.xlu0 %v590, 8
      %v667 = vpop.permute.xlu0 %666
      %668 = vrot.lane.b32.xlu0 %v591, 8
      %v669 = vpop.permute.xlu0 %668
      %670 = vrot.lane.b32.xlu0 %v592, 8
      %v671 = vpop.permute.xlu0 %670
      %672 = vrot.lane.b32.xlu0 %v593, 8
      %v673 = vpop.permute.xlu0 %672
      %674 = vrot.lane.b32.xlu0 %v594, 8
      %v675 = vpop.permute.xlu0 %674
      %676 = vrot.lane.b32.xlu0 %v595, 8
      %v677 = vpop.permute.xlu0 %676
      %678 = vrot.lane.b32.xlu0 %v596, 8
      %v679 = vpop.permute.xlu0 %678
      %680 = vrot.lane.b32.xlu0 %v597, 8
      %v681 = vpop.permute.xlu0 %680
      %682 = vrot.lane.b32.xlu0 %v598, 8
      %v683 = vpop.permute.xlu0 %682
      %684 = vrot.lane.b32.xlu0 %v599, 8
      %v685 = vpop.permute.xlu0 %684
      %686 = vrot.lane.b32.xlu0 %v600, 8
      %v687 = vpop.permute.xlu0 %686
      %688 = vrot.lane.b32.xlu0 %v601, 8
      %v689 = vpop.permute.xlu0 %688
      %690 = vrot.lane.b32.xlu0 %v602, 8
      %v691 = vpop.permute.xlu0 %690
      %692 = vrot.lane.b32.xlu0 %v603, 8
      %v693 = vpop.permute.xlu0 %692
      %694 = vrot.lane.b32.xlu0 %v604, 8
      %v695 = vpop.permute.xlu0 %694
      %696 = vrot.lane.b32.xlu0 %v605, 8
      %v697 = vpop.permute.xlu0 %696
      %698 = vrot.lane.b32.xlu0 %v606, 8
      %v699 = vpop.permute.xlu0 %698
      %700 = vrot.lane.b32.xlu0 %v607, 8
      %v701 = vpop.permute.xlu0 %700
      %702 = vrot.lane.b32.xlu0 %v608, 8
      %v703 = vpop.permute.xlu0 %702
      %704 = vrot.lane.b32.xlu0 %v609, 8
      %v705 = vpop.permute.xlu0 %704
      %vm738 = vcmask 97344
      %739 = vst.msk [vmem:[#allocation3] sm:$0xff] %vm738, %v643
      %740 = vst.msk [vmem:[#allocation3 + $0x8] sm:$0xff] %vm738, %v645
      %741 = vst.msk [vmem:[#allocation3 + $0x10] sm:$0xff] %vm738, %v647
      %742 = vst.msk [vmem:[#allocation3 + $0x18] sm:$0xff] %vm738, %v649
      %743 = vst.msk [vmem:[#allocation3 + $0x20] sm:$0xff] %vm738, %v651
      %744 = vst.msk [vmem:[#allocation3 + $0x28] sm:$0xff] %vm738, %v653
      %745 = vst.msk [vmem:[#allocation3 + $0x30] sm:$0xff] %vm738, %v655
      %746 = vst.msk [vmem:[#allocation3 + $0x38] sm:$0xff] %vm738, %v657
      %747 = vst.msk [vmem:[#allocation3 + $0x40] sm:$0xff] %vm738, %v659
      %748 = vst.msk [vmem:[#allocation3 + $0x48] sm:$0xff] %vm738, %v661
      %749 = vst.msk [vmem:[#allocation3 + $0x50] sm:$0xff] %vm738, %v663
      %750 = vst.msk [vmem:[#allocation3 + $0x58] sm:$0xff] %vm738, %v665
      %751 = vst.msk [vmem:[#allocation3 + $0x60] sm:$0xff] %vm738, %v667
      %752 = vst.msk [vmem:[#allocation3 + $0x68] sm:$0xff] %vm738, %v669
      %753 = vst.msk [vmem:[#allocation3 + $0x70] sm:$0xff] %vm738, %v671
      %754 = vst.msk [vmem:[#allocation3 + $0x78] sm:$0xff] %vm738, %v673
      %755 = vst.msk [vmem:[#allocation3 + $0x80] sm:$0xff] %vm738, %v675
      %756 = vst.msk [vmem:[#allocation3 + $0x88] sm:$0xff] %vm738, %v677
      %757 = vst.msk [vmem:[#allocation3 + $0x90] sm:$0xff] %vm738, %v679
      %758 = vst.msk [vmem:[#allocation3 + $0x98] sm:$0xff] %vm738, %v681
      %759 = vst.msk [vmem:[#allocation3 + $0xa0] sm:$0xff] %vm738, %v683
      %760 = vst.msk [vmem:[#allocation3 + $0xa8] sm:$0xff] %vm738, %v685
      %761 = vst.msk [vmem:[#allocation3 + $0xb0] sm:$0xff] %vm738, %v687
      %762 = vst.msk [vmem:[#allocation3 + $0xb8] sm:$0xff] %vm738, %v689
      %763 = vst.msk [vmem:[#allocation3 + $0xc0] sm:$0xff] %vm738, %v691
      %764 = vst.msk [vmem:[#allocation3 + $0xc8] sm:$0xff] %vm738, %v693
      %765 = vst.msk [vmem:[#allocation3 + $0xd0] sm:$0xff] %vm738, %v695
      %766 = vst.msk [vmem:[#allocation3 + $0xd8] sm:$0xff] %vm738, %v697
      %767 = vst.msk [vmem:[#allocation3 + $0xe0] sm:$0xff] %vm738, %v699
      %768 = vst.msk [vmem:[#allocation3 + $0xe8] sm:$0xff] %vm738, %v701
      %769 = vst.msk [vmem:[#allocation3 + $0xf0] sm:$0xff] %vm738, %v703
      %770 = vst.msk [vmem:[#allocation3 + $0xf8] sm:$0xff] %vm738, %v705
      %v771 = vld [vmem:[%s288] sm:$0xff]
      %v772 = vld [vmem:[%s288 + $0x8] sm:$0xff]
      %v773 = vld [vmem:[%s288 + $0x18] sm:$0xff]
      %v774 = vld [vmem:[%s288 + $0x20] sm:$0xff]
      %v775 = vld [vmem:[%s288 + $0x30] sm:$0xff]
      %v776 = vld [vmem:[%s288 + $0x38] sm:$0xff]
      %v777 = vld [vmem:[%s288 + $0x48] sm:$0xff]
      %v778 = vld [vmem:[%s288 + $0x50] sm:$0xff]
      %v779 = vld [vmem:[%s288 + $0x60] sm:$0xff]
      %v780 = vld [vmem:[%s288 + $0x68] sm:$0xff]
      %v781 = vld [vmem:[%s288 + $0x78] sm:$0xff]
      %v782 = vld [vmem:[%s288 + $0x80] sm:$0xff]
      %v783 = vld [vmem:[%s288 + $0x90] sm:$0xff]
      %v784 = vld [vmem:[%s288 + $0x98] sm:$0xff]
      %v785 = vld [vmem:[%s288 + $0xa8] sm:$0xff]
      %v786 = vld [vmem:[%s288 + $0xb0] sm:$0xff]
      %v787 = vld [vmem:[%s288 + $0xc0] sm:$0xff]
      %v788 = vld [vmem:[%s288 + $0xc8] sm:$0xff]
      %v789 = vld [vmem:[%s288 + $0xd8] sm:$0xff]
      %v790 = vld [vmem:[%s288 + $0xe0] sm:$0xff]
      %v791 = vld [vmem:[%s288 + $0xf0] sm:$0xff]
      %v792 = vld [vmem:[%s288 + $0xf8] sm:$0xff]
      %v793 = vld [vmem:[%s288 + $0x108] sm:$0xff]
      %v794 = vld [vmem:[%s288 + $0x110] sm:$0xff]
      %v795 = vld [vmem:[%s288 + $0x120] sm:$0xff]
      %v796 = vld [vmem:[%s288 + $0x128] sm:$0xff]
      %v797 = vld [vmem:[%s288 + $0x138] sm:$0xff]
      %v798 = vld [vmem:[%s288 + $0x140] sm:$0xff]
      %v799 = vld [vmem:[%s288 + $0x150] sm:$0xff]
      %v800 = vld [vmem:[%s288 + $0x158] sm:$0xff]
      %v801 = vld [vmem:[%s288 + $0x168] sm:$0xff]
      %v802 = vld [vmem:[%s288 + $0x170] sm:$0xff]
      %835 = vrot.lane.b32.xlu0 %v771, 12
      %v836 = vpop.permute.xlu0 %835
      %837 = vrot.lane.b32.xlu0 %v772, 12
      %v838 = vpop.permute.xlu0 %837
      %839 = vrot.lane.b32.xlu0 %v773, 12
      %v840 = vpop.permute.xlu0 %839
      %841 = vrot.lane.b32.xlu0 %v774, 12
      %v842 = vpop.permute.xlu0 %841
      %843 = vrot.lane.b32.xlu0 %v775, 12
      %v844 = vpop.permute.xlu0 %843
      %845 = vrot.lane.b32.xlu0 %v776, 12
      %v846 = vpop.permute.xlu0 %845
      %847 = vrot.lane.b32.xlu0 %v777, 12
      %v848 = vpop.permute.xlu0 %847
      %849 = vrot.lane.b32.xlu0 %v778, 12
      %v850 = vpop.permute.xlu0 %849
      %851 = vrot.lane.b32.xlu0 %v779, 12
      %v852 = vpop.permute.xlu0 %851
      %853 = vrot.lane.b32.xlu0 %v780, 12
      %v854 = vpop.permute.xlu0 %853
      %855 = vrot.lane.b32.xlu0 %v781, 12
      %v856 = vpop.permute.xlu0 %855
      %857 = vrot.lane.b32.xlu0 %v782, 12
      %v858 = vpop.permute.xlu0 %857
      %859 = vrot.lane.b32.xlu0 %v783, 12
      %v860 = vpop.permute.xlu0 %859
      %861 = vrot.lane.b32.xlu0 %v784, 12
      %v862 = vpop.permute.xlu0 %861
      %863 = vrot.lane.b32.xlu0 %v785, 12
      %v864 = vpop.permute.xlu0 %863
      %865 = vrot.lane.b32.xlu0 %v786, 12
      %v866 = vpop.permute.xlu0 %865
      %867 = vrot.lane.b32.xlu0 %v787, 12
      %v868 = vpop.permute.xlu0 %867
      %869 = vrot.lane.b32.xlu0 %v788, 12
      %v870 = vpop.permute.xlu0 %869
      %871 = vrot.lane.b32.xlu0 %v789, 12
      %v872 = vpop.permute.xlu0 %871
      %873 = vrot.lane.b32.xlu0 %v790, 12
      %v874 = vpop.permute.xlu0 %873
      %875 = vrot.lane.b32.xlu0 %v791, 12
      %v876 = vpop.permute.xlu0 %875
      %877 = vrot.lane.b32.xlu0 %v792, 12
      %v878 = vpop.permute.xlu0 %877
      %879 = vrot.lane.b32.xlu0 %v793, 12
      %v880 = vpop.permute.xlu0 %879
      %881 = vrot.lane.b32.xlu0 %v794, 12
      %v882 = vpop.permute.xlu0 %881
      %883 = vrot.lane.b32.xlu0 %v795, 12
      %v884 = vpop.permute.xlu0 %883
      %885 = vrot.lane.b32.xlu0 %v796, 12
      %v886 = vpop.permute.xlu0 %885
      %887 = vrot.lane.b32.xlu0 %v797, 12
      %v888 = vpop.permute.xlu0 %887
      %889 = vrot.lane.b32.xlu0 %v798, 12
      %v890 = vpop.permute.xlu0 %889
      %891 = vrot.lane.b32.xlu0 %v799, 12
      %v892 = vpop.permute.xlu0 %891
      %893 = vrot.lane.b32.xlu0 %v800, 12
      %v894 = vpop.permute.xlu0 %893
      %895 = vrot.lane.b32.xlu0 %v801, 12
      %v896 = vpop.permute.xlu0 %895
      %897 = vrot.lane.b32.xlu0 %v802, 12
      %v898 = vpop.permute.xlu0 %897
      %vm931 = vcmask 130144
      %932 = vst.msk [vmem:[#allocation3] sm:$0xff] %vm931, %v836
      %933 = vst.msk [vmem:[#allocation3 + $0x8] sm:$0xff] %vm931, %v838
      %934 = vst.msk [vmem:[#allocation3 + $0x10] sm:$0xff] %vm931, %v840
      %935 = vst.msk [vmem:[#allocation3 + $0x18] sm:$0xff] %vm931, %v842
      %936 = vst.msk [vmem:[#allocation3 + $0x20] sm:$0xff] %vm931, %v844
      %937 = vst.msk [vmem:[#allocation3 + $0x28] sm:$0xff] %vm931, %v846
      %938 = vst.msk [vmem:[#allocation3 + $0x30] sm:$0xff] %vm931, %v848
      %939 = vst.msk [vmem:[#allocation3 + $0x38] sm:$0xff] %vm931, %v850
      %940 = vst.msk [vmem:[#allocation3 + $0x40] sm:$0xff] %vm931, %v852
      %941 = vst.msk [vmem:[#allocation3 + $0x48] sm:$0xff] %vm931, %v854
      %942 = vst.msk [vmem:[#allocation3 + $0x50] sm:$0xff] %vm931, %v856
      %943 = vst.msk [vmem:[#allocation3 + $0x58] sm:$0xff] %vm931, %v858
      %944 = vst.msk [vmem:[#allocation3 + $0x60] sm:$0xff] %vm931, %v860
      %945 = vst.msk [vmem:[#allocation3 + $0x68] sm:$0xff] %vm931, %v862
      %946 = vst.msk [vmem:[#allocation3 + $0x70] sm:$0xff] %vm931, %v864
      %947 = vst.msk [vmem:[#allocation3 + $0x78] sm:$0xff] %vm931, %v866
      %948 = vst.msk [vmem:[#allocation3 + $0x80] sm:$0xff] %vm931, %v868
      %949 = vst.msk [vmem:[#allocation3 + $0x88] sm:$0xff] %vm931, %v870
      %950 = vst.msk [vmem:[#allocation3 + $0x90] sm:$0xff] %vm931, %v872
      %951 = vst.msk [vmem:[#allocation3 + $0x98] sm:$0xff] %vm931, %v874
      %952 = vst.msk [vmem:[#allocation3 + $0xa0] sm:$0xff] %vm931, %v876
      %953 = vst.msk [vmem:[#allocation3 + $0xa8] sm:$0xff] %vm931, %v878
      %954 = vst.msk [vmem:[#allocation3 + $0xb0] sm:$0xff] %vm931, %v880
      %955 = vst.msk [vmem:[#allocation3 + $0xb8] sm:$0xff] %vm931, %v882
      %956 = vst.msk [vmem:[#allocation3 + $0xc0] sm:$0xff] %vm931, %v884
      %957 = vst.msk [vmem:[#allocation3 + $0xc8] sm:$0xff] %vm931, %v886
      %958 = vst.msk [vmem:[#allocation3 + $0xd0] sm:$0xff] %vm931, %v888
      %959 = vst.msk [vmem:[#allocation3 + $0xd8] sm:$0xff] %vm931, %v890
      %960 = vst.msk [vmem:[#allocation3 + $0xe0] sm:$0xff] %vm931, %v892
      %961 = vst.msk [vmem:[#allocation3 + $0xe8] sm:$0xff] %vm931, %v894
      %962 = vst.msk [vmem:[#allocation3 + $0xf0] sm:$0xff] %vm931, %v896
      %963 = vst.msk [vmem:[#allocation3 + $0xf8] sm:$0xff] %vm931, %v898
      %v964 = vld [vmem:[%s288 + $0x1] sm:$0xff]
      %v965 = vld [vmem:[%s288 + $0x9] sm:$0xff]
      %v966 = vld [vmem:[%s288 + $0x19] sm:$0xff]
      %v967 = vld [vmem:[%s288 + $0x21] sm:$0xff]
      %v968 = vld [vmem:[%s288 + $0x31] sm:$0xff]
      %v969 = vld [vmem:[%s288 + $0x39] sm:$0xff]
      %v970 = vld [vmem:[%s288 + $0x49] sm:$0xff]
      %v971 = vld [vmem:[%s288 + $0x51] sm:$0xff]
      %v972 = vld [vmem:[%s288 + $0x61] sm:$0xff]
      %v973 = vld [vmem:[%s288 + $0x69] sm:$0xff]
      %v974 = vld [vmem:[%s288 + $0x79] sm:$0xff]
      %v975 = vld [vmem:[%s288 + $0x81] sm:$0xff]
      %v976 = vld [vmem:[%s288 + $0x91] sm:$0xff]
      %v977 = vld [vmem:[%s288 + $0x99] sm:$0xff]
      %v978 = vld [vmem:[%s288 + $0xa9] sm:$0xff]
      %v979 = vld [vmem:[%s288 + $0xb1] sm:$0xff]
      %v980 = vld [vmem:[%s288 + $0xc1] sm:$0xff]
      %v981 = vld [vmem:[%s288 + $0xc9] sm:$0xff]
      %v982 = vld [vmem:[%s288 + $0xd9] sm:$0xff]
      %v983 = vld [vmem:[%s288 + $0xe1] sm:$0xff]
      %v984 = vld [vmem:[%s288 + $0xf1] sm:$0xff]
      %v985 = vld [vmem:[%s288 + $0xf9] sm:$0xff]
      %v986 = vld [vmem:[%s288 + $0x109] sm:$0xff]
      %v987 = vld [vmem:[%s288 + $0x111] sm:$0xff]
      %v988 = vld [vmem:[%s288 + $0x121] sm:$0xff]
      %v989 = vld [vmem:[%s288 + $0x129] sm:$0xff]
      %v990 = vld [vmem:[%s288 + $0x139] sm:$0xff]
      %v991 = vld [vmem:[%s288 + $0x141] sm:$0xff]
      %v992 = vld [vmem:[%s288 + $0x151] sm:$0xff]
      %v993 = vld [vmem:[%s288 + $0x159] sm:$0xff]
      %v994 = vld [vmem:[%s288 + $0x169] sm:$0xff]
      %v995 = vld [vmem:[%s288 + $0x171] sm:$0xff]
      %1028 = vrot.lane.b32.xlu0 %v964, 16
      %v1029 = vpop.permute.xlu0 %1028
      %1030 = vrot.lane.b32.xlu0 %v965, 16
      %v1031 = vpop.permute.xlu0 %1030
      %1032 = vrot.lane.b32.xlu0 %v966, 16
      %v1033 = vpop.permute.xlu0 %1032
      %1034 = vrot.lane.b32.xlu0 %v967, 16
      %v1035 = vpop.permute.xlu0 %1034
      %1036 = vrot.lane.b32.xlu0 %v968, 16
      %v1037 = vpop.permute.xlu0 %1036
      %1038 = vrot.lane.b32.xlu0 %v969, 16
      %v1039 = vpop.permute.xlu0 %1038
      %1040 = vrot.lane.b32.xlu0 %v970, 16
      %v1041 = vpop.permute.xlu0 %1040
      %1042 = vrot.lane.b32.xlu0 %v971, 16
      %v1043 = vpop.permute.xlu0 %1042
      %1044 = vrot.lane.b32.xlu0 %v972, 16
      %v1045 = vpop.permute.xlu0 %1044
      %1046 = vrot.lane.b32.xlu0 %v973, 16
      %v1047 = vpop.permute.xlu0 %1046
      %1048 = vrot.lane.b32.xlu0 %v974, 16
      %v1049 = vpop.permute.xlu0 %1048
      %1050 = vrot.lane.b32.xlu0 %v975, 16
      %v1051 = vpop.permute.xlu0 %1050
      %1052 = vrot.lane.b32.xlu0 %v976, 16
      %v1053 = vpop.permute.xlu0 %1052
      %1054 = vrot.lane.b32.xlu0 %v977, 16
      %v1055 = vpop.permute.xlu0 %1054
      %1056 = vrot.lane.b32.xlu0 %v978, 16
      %v1057 = vpop.permute.xlu0 %1056
      %1058 = vrot.lane.b32.xlu0 %v979, 16
      %v1059 = vpop.permute.xlu0 %1058
      %1060 = vrot.lane.b32.xlu0 %v980, 16
      %v1061 = vpop.permute.xlu0 %1060
      %1062 = vrot.lane.b32.xlu0 %v981, 16
      %v1063 = vpop.permute.xlu0 %1062
      %1064 = vrot.lane.b32.xlu0 %v982, 16
      %v1065 = vpop.permute.xlu0 %1064
      %1066 = vrot.lane.b32.xlu0 %v983, 16
      %v1067 = vpop.permute.xlu0 %1066
      %1068 = vrot.lane.b32.xlu0 %v984, 16
      %v1069 = vpop.permute.xlu0 %1068
      %1070 = vrot.lane.b32.xlu0 %v985, 16
      %v1071 = vpop.permute.xlu0 %1070
      %1072 = vrot.lane.b32.xlu0 %v986, 16
      %v1073 = vpop.permute.xlu0 %1072
      %1074 = vrot.lane.b32.xlu0 %v987, 16
      %v1075 = vpop.permute.xlu0 %1074
      %1076 = vrot.lane.b32.xlu0 %v988, 16
      %v1077 = vpop.permute.xlu0 %1076
      %1078 = vrot.lane.b32.xlu0 %v989, 16
      %v1079 = vpop.permute.xlu0 %1078
      %1080 = vrot.lane.b32.xlu0 %v990, 16
      %v1081 = vpop.permute.xlu0 %1080
      %1082 = vrot.lane.b32.xlu0 %v991, 16
      %v1083 = vpop.permute.xlu0 %1082
      %1084 = vrot.lane.b32.xlu0 %v992, 16
      %v1085 = vpop.permute.xlu0 %1084
      %1086 = vrot.lane.b32.xlu0 %v993, 16
      %v1087 = vpop.permute.xlu0 %1086
      %1088 = vrot.lane.b32.xlu0 %v994, 16
      %v1089 = vpop.permute.xlu0 %1088
      %1090 = vrot.lane.b32.xlu0 %v995, 16
      %v1091 = vpop.permute.xlu0 %1090
      %vm1124 = vcmask 162944
      %1125 = vst.msk [vmem:[#allocation3] sm:$0xff] %vm1124, %v1029
      %1126 = vst.msk [vmem:[#allocation3 + $0x8] sm:$0xff] %vm1124, %v1031
      %1127 = vst.msk [vmem:[#allocation3 + $0x10] sm:$0xff] %vm1124, %v1033
      %1128 = vst.msk [vmem:[#allocation3 + $0x18] sm:$0xff] %vm1124, %v1035
      %1129 = vst.msk [vmem:[#allocation3 + $0x20] sm:$0xff] %vm1124, %v1037
      %1130 = vst.msk [vmem:[#allocation3 + $0x28] sm:$0xff] %vm1124, %v1039
      %1131 = vst.msk [vmem:[#allocation3 + $0x30] sm:$0xff] %vm1124, %v1041
      %1132 = vst.msk [vmem:[#allocation3 + $0x38] sm:$0xff] %vm1124, %v1043
      %1133 = vst.msk [vmem:[#allocation3 + $0x40] sm:$0xff] %vm1124, %v1045
      %1134 = vst.msk [vmem:[#allocation3 + $0x48] sm:$0xff] %vm1124, %v1047
      %1135 = vst.msk [vmem:[#allocation3 + $0x50] sm:$0xff] %vm1124, %v1049
      %1136 = vst.msk [vmem:[#allocation3 + $0x58] sm:$0xff] %vm1124, %v1051
      %1137 = vst.msk [vmem:[#allocation3 + $0x60] sm:$0xff] %vm1124, %v1053
      %1138 = vst.msk [vmem:[#allocation3 + $0x68] sm:$0xff] %vm1124, %v1055
      %1139 = vst.msk [vmem:[#allocation3 + $0x70] sm:$0xff] %vm1124, %v1057
      %1140 = vst.msk [vmem:[#allocation3 + $0x78] sm:$0xff] %vm1124, %v1059
      %1141 = vst.msk [vmem:[#allocation3 + $0x80] sm:$0xff] %vm1124, %v1061
      %1142 = vst.msk [vmem:[#allocation3 + $0x88] sm:$0xff] %vm1124, %v1063
      %1143 = vst.msk [vmem:[#allocation3 + $0x90] sm:$0xff] %vm1124, %v1065
      %1144 = vst.msk [vmem:[#allocation3 + $0x98] sm:$0xff] %vm1124, %v1067
      %1145 = vst.msk [vmem:[#allocation3 + $0xa0] sm:$0xff] %vm1124, %v1069
      %1146 = vst.msk [vmem:[#allocation3 + $0xa8] sm:$0xff] %vm1124, %v1071
      %1147 = vst.msk [vmem:[#allocation3 + $0xb0] sm:$0xff] %vm1124, %v1073
      %1148 = vst.msk [vmem:[#allocation3 + $0xb8] sm:$0xff] %vm1124, %v1075
      %1149 = vst.msk [vmem:[#allocation3 + $0xc0] sm:$0xff] %vm1124, %v1077
      %1150 = vst.msk [vmem:[#allocation3 + $0xc8] sm:$0xff] %vm1124, %v1079
      %1151 = vst.msk [vmem:[#allocation3 + $0xd0] sm:$0xff] %vm1124, %v1081
      %1152 = vst.msk [vmem:[#allocation3 + $0xd8] sm:$0xff] %vm1124, %v1083
      %1153 = vst.msk [vmem:[#allocation3 + $0xe0] sm:$0xff] %vm1124, %v1085
      %1154 = vst.msk [vmem:[#allocation3 + $0xe8] sm:$0xff] %vm1124, %v1087
      %1155 = vst.msk [vmem:[#allocation3 + $0xf0] sm:$0xff] %vm1124, %v1089
      %1156 = vst.msk [vmem:[#allocation3 + $0xf8] sm:$0xff] %vm1124, %v1091
      %v1157 = vld [vmem:[%s288 + $0x2] sm:$0xff]
      %v1158 = vld [vmem:[%s288 + $0xa] sm:$0xff]
      %v1159 = vld [vmem:[%s288 + $0x1a] sm:$0xff]
      %v1160 = vld [vmem:[%s288 + $0x22] sm:$0xff]
      %v1161 = vld [vmem:[%s288 + $0x32] sm:$0xff]
      %v1162 = vld [vmem:[%s288 + $0x3a] sm:$0xff]
      %v1163 = vld [vmem:[%s288 + $0x4a] sm:$0xff]
      %v1164 = vld [vmem:[%s288 + $0x52] sm:$0xff]
      %v1165 = vld [vmem:[%s288 + $0x62] sm:$0xff]
      %v1166 = vld [vmem:[%s288 + $0x6a] sm:$0xff]
      %v1167 = vld [vmem:[%s288 + $0x7a] sm:$0xff]
      %v1168 = vld [vmem:[%s288 + $0x82] sm:$0xff]
      %v1169 = vld [vmem:[%s288 + $0x92] sm:$0xff]
      %v1170 = vld [vmem:[%s288 + $0x9a] sm:$0xff]
      %v1171 = vld [vmem:[%s288 + $0xaa] sm:$0xff]
      %v1172 = vld [vmem:[%s288 + $0xb2] sm:$0xff]
      %v1173 = vld [vmem:[%s288 + $0xc2] sm:$0xff]
      %v1174 = vld [vmem:[%s288 + $0xca] sm:$0xff]
      %v1175 = vld [vmem:[%s288 + $0xda] sm:$0xff]
      %v1176 = vld [vmem:[%s288 + $0xe2] sm:$0xff]
      %v1177 = vld [vmem:[%s288 + $0xf2] sm:$0xff]
      %v1178 = vld [vmem:[%s288 + $0xfa] sm:$0xff]
      %v1179 = vld [vmem:[%s288 + $0x10a] sm:$0xff]
      %v1180 = vld [vmem:[%s288 + $0x112] sm:$0xff]
      %v1181 = vld [vmem:[%s288 + $0x122] sm:$0xff]
      %v1182 = vld [vmem:[%s288 + $0x12a] sm:$0xff]
      %v1183 = vld [vmem:[%s288 + $0x13a] sm:$0xff]
      %v1184 = vld [vmem:[%s288 + $0x142] sm:$0xff]
      %v1185 = vld [vmem:[%s288 + $0x152] sm:$0xff]
      %v1186 = vld [vmem:[%s288 + $0x15a] sm:$0xff]
      %v1187 = vld [vmem:[%s288 + $0x16a] sm:$0xff]
      %v1188 = vld [vmem:[%s288 + $0x172] sm:$0xff]
      %1221 = vrot.lane.b32.xlu0 %v1157, 20
      %v1222 = vpop.permute.xlu0 %1221
      %1223 = vrot.lane.b32.xlu0 %v1158, 20
      %v1224 = vpop.permute.xlu0 %1223
      %1225 = vrot.lane.b32.xlu0 %v1159, 20
      %v1226 = vpop.permute.xlu0 %1225
      %1227 = vrot.lane.b32.xlu0 %v1160, 20
      %v1228 = vpop.permute.xlu0 %1227
      %1229 = vrot.lane.b32.xlu0 %v1161, 20
      %v1230 = vpop.permute.xlu0 %1229
      %1231 = vrot.lane.b32.xlu0 %v1162, 20
      %v1232 = vpop.permute.xlu0 %1231
      %1233 = vrot.lane.b32.xlu0 %v1163, 20
      %v1234 = vpop.permute.xlu0 %1233
      %1235 = vrot.lane.b32.xlu0 %v1164, 20
      %v1236 = vpop.permute.xlu0 %1235
      %1237 = vrot.lane.b32.xlu0 %v1165, 20
      %v1238 = vpop.permute.xlu0 %1237
      %1239 = vrot.lane.b32.xlu0 %v1166, 20
      %v1240 = vpop.permute.xlu0 %1239
      %1241 = vrot.lane.b32.xlu0 %v1167, 20
      %v1242 = vpop.permute.xlu0 %1241
      %1243 = vrot.lane.b32.xlu0 %v1168, 20
      %v1244 = vpop.permute.xlu0 %1243
      %1245 = vrot.lane.b32.xlu0 %v1169, 20
      %v1246 = vpop.permute.xlu0 %1245
      %1247 = vrot.lane.b32.xlu0 %v1170, 20
      %v1248 = vpop.permute.xlu0 %1247
      %1249 = vrot.lane.b32.xlu0 %v1171, 20
      %v1250 = vpop.permute.xlu0 %1249
      %1251 = vrot.lane.b32.xlu0 %v1172, 20
      %v1252 = vpop.permute.xlu0 %1251
      %1253 = vrot.lane.b32.xlu0 %v1173, 20
      %v1254 = vpop.permute.xlu0 %1253
      %1255 = vrot.lane.b32.xlu0 %v1174, 20
      %v1256 = vpop.permute.xlu0 %1255
      %1257 = vrot.lane.b32.xlu0 %v1175, 20
      %v1258 = vpop.permute.xlu0 %1257
      %1259 = vrot.lane.b32.xlu0 %v1176, 20
      %v1260 = vpop.permute.xlu0 %1259
      %1261 = vrot.lane.b32.xlu0 %v1177, 20
      %v1262 = vpop.permute.xlu0 %1261
      %1263 = vrot.lane.b32.xlu0 %v1178, 20
      %v1264 = vpop.permute.xlu0 %1263
      %1265 = vrot.lane.b32.xlu0 %v1179, 20
      %v1266 = vpop.permute.xlu0 %1265
      %1267 = vrot.lane.b32.xlu0 %v1180, 20
      %v1268 = vpop.permute.xlu0 %1267
      %1269 = vrot.lane.b32.xlu0 %v1181, 20
      %v1270 = vpop.permute.xlu0 %1269
      %1271 = vrot.lane.b32.xlu0 %v1182, 20
      %v1272 = vpop.permute.xlu0 %1271
      %1273 = vrot.lane.b32.xlu0 %v1183, 20
      %v1274 = vpop.permute.xlu0 %1273
      %1275 = vrot.lane.b32.xlu0 %v1184, 20
      %v1276 = vpop.permute.xlu0 %1275
      %1277 = vrot.lane.b32.xlu0 %v1185, 20
      %v1278 = vpop.permute.xlu0 %1277
      %1279 = vrot.lane.b32.xlu0 %v1186, 20
      %v1280 = vpop.permute.xlu0 %1279
      %1281 = vrot.lane.b32.xlu0 %v1187, 20
      %v1282 = vpop.permute.xlu0 %1281
      %1283 = vrot.lane.b32.xlu0 %v1188, 20
      %v1284 = vpop.permute.xlu0 %1283
      %vm1317 = vcmask 195744
      %1318 = vst.msk [vmem:[#allocation3] sm:$0xff] %vm1317, %v1222
      %1319 = vst.msk [vmem:[#allocation3 + $0x8] sm:$0xff] %vm1317, %v1224
      %1320 = vst.msk [vmem:[#allocation3 + $0x10] sm:$0xff] %vm1317, %v1226
      %1321 = vst.msk [vmem:[#allocation3 + $0x18] sm:$0xff] %vm1317, %v1228
      %1322 = vst.msk [vmem:[#allocation3 + $0x20] sm:$0xff] %vm1317, %v1230
      %1323 = vst.msk [vmem:[#allocation3 + $0x28] sm:$0xff] %vm1317, %v1232
      %1324 = vst.msk [vmem:[#allocation3 + $0x30] sm:$0xff] %vm1317, %v1234
      %1325 = vst.msk [vmem:[#allocation3 + $0x38] sm:$0xff] %vm1317, %v1236
      %1326 = vst.msk [vmem:[#allocation3 + $0x40] sm:$0xff] %vm1317, %v1238
      %1327 = vst.msk [vmem:[#allocation3 + $0x48] sm:$0xff] %vm1317, %v1240
      %1328 = vst.msk [vmem:[#allocation3 + $0x50] sm:$0xff] %vm1317, %v1242
      %1329 = vst.msk [vmem:[#allocation3 + $0x58] sm:$0xff] %vm1317, %v1244
      %1330 = vst.msk [vmem:[#allocation3 + $0x60] sm:$0xff] %vm1317, %v1246
      %1331 = vst.msk [vmem:[#allocation3 + $0x68] sm:$0xff] %vm1317, %v1248
      %1332 = vst.msk [vmem:[#allocation3 + $0x70] sm:$0xff] %vm1317, %v1250
      %1333 = vst.msk [vmem:[#allocation3 + $0x78] sm:$0xff] %vm1317, %v1252
      %1334 = vst.msk [vmem:[#allocation3 + $0x80] sm:$0xff] %vm1317, %v1254
      %1335 = vst.msk [vmem:[#allocation3 + $0x88] sm:$0xff] %vm1317, %v1256
      %1336 = vst.msk [vmem:[#allocation3 + $0x90] sm:$0xff] %vm1317, %v1258
      %1337 = vst.msk [vmem:[#allocation3 + $0x98] sm:$0xff] %vm1317, %v1260
      %1338 = vst.msk [vmem:[#allocation3 + $0xa0] sm:$0xff] %vm1317, %v1262
      %1339 = vst.msk [vmem:[#allocation3 + $0xa8] sm:$0xff] %vm1317, %v1264
      %1340 = vst.msk [vmem:[#allocation3 + $0xb0] sm:$0xff] %vm1317, %v1266
      %1341 = vst.msk [vmem:[#allocation3 + $0xb8] sm:$0xff] %vm1317, %v1268
      %1342 = vst.msk [vmem:[#allocation3 + $0xc0] sm:$0xff] %vm1317, %v1270
      %1343 = vst.msk [vmem:[#allocation3 + $0xc8] sm:$0xff] %vm1317, %v1272
      %1344 = vst.msk [vmem:[#allocation3 + $0xd0] sm:$0xff] %vm1317, %v1274
      %1345 = vst.msk [vmem:[#allocation3 + $0xd8] sm:$0xff] %vm1317, %v1276
      %1346 = vst.msk [vmem:[#allocation3 + $0xe0] sm:$0xff] %vm1317, %v1278
      %1347 = vst.msk [vmem:[#allocation3 + $0xe8] sm:$0xff] %vm1317, %v1280
      %1348 = vst.msk [vmem:[#allocation3 + $0xf0] sm:$0xff] %vm1317, %v1282
      %1349 = vst.msk [vmem:[#allocation3 + $0xf8] sm:$0xff] %vm1317, %v1284
      %s1350 = scalar_lea.vmem [#allocation2], 48
      %v1351 = vld [vmem:[%s1350] sm:$0xff]
      %v1352 = vld [vmem:[%s1350 + $0x8] sm:$0xff]
      %v1353 = vld [vmem:[%s1350 + $0x18] sm:$0xff]
      %v1354 = vld [vmem:[%s1350 + $0x20] sm:$0xff]
      %v1355 = vld [vmem:[%s1350 + $0x30] sm:$0xff]
      %v1356 = vld [vmem:[%s1350 + $0x38] sm:$0xff]
      %v1357 = vld [vmem:[%s1350 + $0x48] sm:$0xff]
      %v1358 = vld [vmem:[%s1350 + $0x50] sm:$0xff]
      %v1359 = vld [vmem:[%s1350 + $0x60] sm:$0xff]
      %v1360 = vld [vmem:[%s1350 + $0x68] sm:$0xff]
      %v1361 = vld [vmem:[%s1350 + $0x78] sm:$0xff]
      %v1362 = vld [vmem:[%s1350 + $0x80] sm:$0xff]
      %v1363 = vld [vmem:[%s1350 + $0x90] sm:$0xff]
      %v1364 = vld [vmem:[%s1350 + $0x98] sm:$0xff]
      %v1365 = vld [vmem:[%s1350 + $0xa8] sm:$0xff]
      %v1366 = vld [vmem:[%s1350 + $0xb0] sm:$0xff]
      %v1367 = vld [vmem:[%s1350 + $0xc0] sm:$0xff]
      %v1368 = vld [vmem:[%s1350 + $0xc8] sm:$0xff]
      %v1369 = vld [vmem:[%s1350 + $0xd8] sm:$0xff]
      %v1370 = vld [vmem:[%s1350 + $0xe0] sm:$0xff]
      %v1371 = vld [vmem:[%s1350 + $0xf0] sm:$0xff]
      %v1372 = vld [vmem:[%s1350 + $0xf8] sm:$0xff]
      %v1373 = vld [vmem:[%s1350 + $0x108] sm:$0xff]
      %v1374 = vld [vmem:[%s1350 + $0x110] sm:$0xff]
      %v1375 = vld [vmem:[%s1350 + $0x120] sm:$0xff]
      %v1376 = vld [vmem:[%s1350 + $0x128] sm:$0xff]
      %v1377 = vld [vmem:[%s1350 + $0x138] sm:$0xff]
      %v1378 = vld [vmem:[%s1350 + $0x140] sm:$0xff]
      %v1379 = vld [vmem:[%s1350 + $0x150] sm:$0xff]
      %v1380 = vld [vmem:[%s1350 + $0x158] sm:$0xff]
      %v1381 = vld [vmem:[%s1350 + $0x168] sm:$0xff]
      %v1382 = vld [vmem:[%s1350 + $0x170] sm:$0xff]
      %1415 = vrot.lane.b32.xlu0 %v1351, 24
      %v1416 = vpop.permute.xlu0 %1415
      %1417 = vrot.lane.b32.xlu0 %v1352, 24
      %v1418 = vpop.permute.xlu0 %1417
      %1419 = vrot.lane.b32.xlu0 %v1353, 24
      %v1420 = vpop.permute.xlu0 %1419
      %1421 = vrot.lane.b32.xlu0 %v1354, 24
      %v1422 = vpop.permute.xlu0 %1421
      %1423 = vrot.lane.b32.xlu0 %v1355, 24
      %v1424 = vpop.permute.xlu0 %1423
      %1425 = vrot.lane.b32.xlu0 %v1356, 24
      %v1426 = vpop.permute.xlu0 %1425
      %1427 = vrot.lane.b32.xlu0 %v1357, 24
      %v1428 = vpop.permute.xlu0 %1427
      %1429 = vrot.lane.b32.xlu0 %v1358, 24
      %v1430 = vpop.permute.xlu0 %1429
      %1431 = vrot.lane.b32.xlu0 %v1359, 24
      %v1432 = vpop.permute.xlu0 %1431
      %1433 = vrot.lane.b32.xlu0 %v1360, 24
      %v1434 = vpop.permute.xlu0 %1433
      %1435 = vrot.lane.b32.xlu0 %v1361, 24
      %v1436 = vpop.permute.xlu0 %1435
      %1437 = vrot.lane.b32.xlu0 %v1362, 24
      %v1438 = vpop.permute.xlu0 %1437
      %1439 = vrot.lane.b32.xlu0 %v1363, 24
      %v1440 = vpop.permute.xlu0 %1439
      %1441 = vrot.lane.b32.xlu0 %v1364, 24
      %v1442 = vpop.permute.xlu0 %1441
      %1443 = vrot.lane.b32.xlu0 %v1365, 24
      %v1444 = vpop.permute.xlu0 %1443
      %1445 = vrot.lane.b32.xlu0 %v1366, 24
      %v1446 = vpop.permute.xlu0 %1445
      %1447 = vrot.lane.b32.xlu0 %v1367, 24
      %v1448 = vpop.permute.xlu0 %1447
      %1449 = vrot.lane.b32.xlu0 %v1368, 24
      %v1450 = vpop.permute.xlu0 %1449
      %1451 = vrot.lane.b32.xlu0 %v1369, 24
      %v1452 = vpop.permute.xlu0 %1451
      %1453 = vrot.lane.b32.xlu0 %v1370, 24
      %v1454 = vpop.permute.xlu0 %1453
      %1455 = vrot.lane.b32.xlu0 %v1371, 24
      %v1456 = vpop.permute.xlu0 %1455
      %1457 = vrot.lane.b32.xlu0 %v1372, 24
      %v1458 = vpop.permute.xlu0 %1457
      %1459 = vrot.lane.b32.xlu0 %v1373, 24
      %v1460 = vpop.permute.xlu0 %1459
      %1461 = vrot.lane.b32.xlu0 %v1374, 24
      %v1462 = vpop.permute.xlu0 %1461
      %1463 = vrot.lane.b32.xlu0 %v1375, 24
      %v1464 = vpop.permute.xlu0 %1463
      %1465 = vrot.lane.b32.xlu0 %v1376, 24
      %v1466 = vpop.permute.xlu0 %1465
      %1467 = vrot.lane.b32.xlu0 %v1377, 24
      %v1468 = vpop.permute.xlu0 %1467
      %1469 = vrot.lane.b32.xlu0 %v1378, 24
      %v1470 = vpop.permute.xlu0 %1469
      %1471 = vrot.lane.b32.xlu0 %v1379, 24
      %v1472 = vpop.permute.xlu0 %1471
      %1473 = vrot.lane.b32.xlu0 %v1380, 24
      %v1474 = vpop.permute.xlu0 %1473
      %1475 = vrot.lane.b32.xlu0 %v1381, 24
      %v1476 = vpop.permute.xlu0 %1475
      %1477 = vrot.lane.b32.xlu0 %v1382, 24
      %v1478 = vpop.permute.xlu0 %1477
      %vm1511 = vcmask 228544
      %1512 = vst.msk [vmem:[#allocation3] sm:$0xff] %vm1511, %v1416
      %1513 = vst.msk [vmem:[#allocation3 + $0x8] sm:$0xff] %vm1511, %v1418
      %1514 = vst.msk [vmem:[#allocation3 + $0x10] sm:$0xff] %vm1511, %v1420
      %1515 = vst.msk [vmem:[#allocation3 + $0x18] sm:$0xff] %vm1511, %v1422
      %1516 = vst.msk [vmem:[#allocation3 + $0x20] sm:$0xff] %vm1511, %v1424
      %1517 = vst.msk [vmem:[#allocation3 + $0x28] sm:$0xff] %vm1511, %v1426
      %1518 = vst.msk [vmem:[#allocation3 + $0x30] sm:$0xff] %vm1511, %v1428
      %1519 = vst.msk [vmem:[#allocation3 + $0x38] sm:$0xff] %vm1511, %v1430
      %1520 = vst.msk [vmem:[#allocation3 + $0x40] sm:$0xff] %vm1511, %v1432
      %1521 = vst.msk [vmem:[#allocation3 + $0x48] sm:$0xff] %vm1511, %v1434
      %1522 = vst.msk [vmem:[#allocation3 + $0x50] sm:$0xff] %vm1511, %v1436
      %1523 = vst.msk [vmem:[#allocation3 + $0x58] sm:$0xff] %vm1511, %v1438
      %1524 = vst.msk [vmem:[#allocation3 + $0x60] sm:$0xff] %vm1511, %v1440
      %1525 = vst.msk [vmem:[#allocation3 + $0x68] sm:$0xff] %vm1511, %v1442
      %1526 = vst.msk [vmem:[#allocation3 + $0x70] sm:$0xff] %vm1511, %v1444
      %1527 = vst.msk [vmem:[#allocation3 + $0x78] sm:$0xff] %vm1511, %v1446
      %1528 = vst.msk [vmem:[#allocation3 + $0x80] sm:$0xff] %vm1511, %v1448
      %1529 = vst.msk [vmem:[#allocation3 + $0x88] sm:$0xff] %vm1511, %v1450
      %1530 = vst.msk [vmem:[#allocation3 + $0x90] sm:$0xff] %vm1511, %v1452
      %1531 = vst.msk [vmem:[#allocation3 + $0x98] sm:$0xff] %vm1511, %v1454
      %1532 = vst.msk [vmem:[#allocation3 + $0xa0] sm:$0xff] %vm1511, %v1456
      %1533 = vst.msk [vmem:[#allocation3 + $0xa8] sm:$0xff] %vm1511, %v1458
      %1534 = vst.msk [vmem:[#allocation3 + $0xb0] sm:$0xff] %vm1511, %v1460
      %1535 = vst.msk [vmem:[#allocation3 + $0xb8] sm:$0xff] %vm1511, %v1462
      %1536 = vst.msk [vmem:[#allocation3 + $0xc0] sm:$0xff] %vm1511, %v1464
      %1537 = vst.msk [vmem:[#allocation3 + $0xc8] sm:$0xff] %vm1511, %v1466
      %1538 = vst.msk [vmem:[#allocation3 + $0xd0] sm:$0xff] %vm1511, %v1468
      %1539 = vst.msk [vmem:[#allocation3 + $0xd8] sm:$0xff] %vm1511, %v1470
      %1540 = vst.msk [vmem:[#allocation3 + $0xe0] sm:$0xff] %vm1511, %v1472
      %1541 = vst.msk [vmem:[#allocation3 + $0xe8] sm:$0xff] %vm1511, %v1474
      %1542 = vst.msk [vmem:[#allocation3 + $0xf0] sm:$0xff] %vm1511, %v1476
      %1543 = vst.msk [vmem:[#allocation3 + $0xf8] sm:$0xff] %vm1511, %v1478
      %v1544 = vld [vmem:[%s1350 + $0x1] sm:$0xff]
      %v1545 = vld [vmem:[%s1350 + $0x9] sm:$0xff]
      %v1546 = vld [vmem:[%s1350 + $0x19] sm:$0xff]
      %v1547 = vld [vmem:[%s1350 + $0x21] sm:$0xff]
      %v1548 = vld [vmem:[%s1350 + $0x31] sm:$0xff]
      %v1549 = vld [vmem:[%s1350 + $0x39] sm:$0xff]
      %v1550 = vld [vmem:[%s1350 + $0x49] sm:$0xff]
      %v1551 = vld [vmem:[%s1350 + $0x51] sm:$0xff]
      %v1552 = vld [vmem:[%s1350 + $0x61] sm:$0xff]
      %v1553 = vld [vmem:[%s1350 + $0x69] sm:$0xff]
      %v1554 = vld [vmem:[%s1350 + $0x79] sm:$0xff]
      %v1555 = vld [vmem:[%s1350 + $0x81] sm:$0xff]
      %v1556 = vld [vmem:[%s1350 + $0x91] sm:$0xff]
      %v1557 = vld [vmem:[%s1350 + $0x99] sm:$0xff]
      %v1558 = vld [vmem:[%s1350 + $0xa9] sm:$0xff]
      %v1559 = vld [vmem:[%s1350 + $0xb1] sm:$0xff]
      %v1560 = vld [vmem:[%s1350 + $0xc1] sm:$0xff]
      %v1561 = vld [vmem:[%s1350 + $0xc9] sm:$0xff]
      %v1562 = vld [vmem:[%s1350 + $0xd9] sm:$0xff]
      %v1563 = vld [vmem:[%s1350 + $0xe1] sm:$0xff]
      %v1564 = vld [vmem:[%s1350 + $0xf1] sm:$0xff]
      %v1565 = vld [vmem:[%s1350 + $0xf9] sm:$0xff]
      %v1566 = vld [vmem:[%s1350 + $0x109] sm:$0xff]
      %v1567 = vld [vmem:[%s1350 + $0x111] sm:$0xff]
      %v1568 = vld [vmem:[%s1350 + $0x121] sm:$0xff]
      %v1569 = vld [vmem:[%s1350 + $0x129] sm:$0xff]
      %v1570 = vld [vmem:[%s1350 + $0x139] sm:$0xff]
      %v1571 = vld [vmem:[%s1350 + $0x141] sm:$0xff]
      %v1572 = vld [vmem:[%s1350 + $0x151] sm:$0xff]
      %v1573 = vld [vmem:[%s1350 + $0x159] sm:$0xff]
      %v1574 = vld [vmem:[%s1350 + $0x169] sm:$0xff]
      %v1575 = vld [vmem:[%s1350 + $0x171] sm:$0xff]
      %1608 = vrot.lane.b32.xlu0 %v1544, 28
      %v1609 = vpop.permute.xlu0 %1608
      %1610 = vrot.lane.b32.xlu0 %v1545, 28
      %v1611 = vpop.permute.xlu0 %1610
      %1612 = vrot.lane.b32.xlu0 %v1546, 28
      %v1613 = vpop.permute.xlu0 %1612
      %1614 = vrot.lane.b32.xlu0 %v1547, 28
      %v1615 = vpop.permute.xlu0 %1614
      %1616 = vrot.lane.b32.xlu0 %v1548, 28
      %v1617 = vpop.permute.xlu0 %1616
      %1618 = vrot.lane.b32.xlu0 %v1549, 28
      %v1619 = vpop.permute.xlu0 %1618
      %1620 = vrot.lane.b32.xlu0 %v1550, 28
      %v1621 = vpop.permute.xlu0 %1620
      %1622 = vrot.lane.b32.xlu0 %v1551, 28
      %v1623 = vpop.permute.xlu0 %1622
      %1624 = vrot.lane.b32.xlu0 %v1552, 28
      %v1625 = vpop.permute.xlu0 %1624
      %1626 = vrot.lane.b32.xlu0 %v1553, 28
      %v1627 = vpop.permute.xlu0 %1626
      %1628 = vrot.lane.b32.xlu0 %v1554, 28
      %v1629 = vpop.permute.xlu0 %1628
      %1630 = vrot.lane.b32.xlu0 %v1555, 28
      %v1631 = vpop.permute.xlu0 %1630
      %1632 = vrot.lane.b32.xlu0 %v1556, 28
      %v1633 = vpop.permute.xlu0 %1632
      %1634 = vrot.lane.b32.xlu0 %v1557, 28
      %v1635 = vpop.permute.xlu0 %1634
      %1636 = vrot.lane.b32.xlu0 %v1558, 28
      %v1637 = vpop.permute.xlu0 %1636
      %1638 = vrot.lane.b32.xlu0 %v1559, 28
      %v1639 = vpop.permute.xlu0 %1638
      %1640 = vrot.lane.b32.xlu0 %v1560, 28
      %v1641 = vpop.permute.xlu0 %1640
      %1642 = vrot.lane.b32.xlu0 %v1561, 28
      %v1643 = vpop.permute.xlu0 %1642
      %1644 = vrot.lane.b32.xlu0 %v1562, 28
      %v1645 = vpop.permute.xlu0 %1644
      %1646 = vrot.lane.b32.xlu0 %v1563, 28
      %v1647 = vpop.permute.xlu0 %1646
      %1648 = vrot.lane.b32.xlu0 %v1564, 28
      %v1649 = vpop.permute.xlu0 %1648
      %1650 = vrot.lane.b32.xlu0 %v1565, 28
      %v1651 = vpop.permute.xlu0 %1650
      %1652 = vrot.lane.b32.xlu0 %v1566, 28
      %v1653 = vpop.permute.xlu0 %1652
      %1654 = vrot.lane.b32.xlu0 %v1567, 28
      %v1655 = vpop.permute.xlu0 %1654
      %1656 = vrot.lane.b32.xlu0 %v1568, 28
      %v1657 = vpop.permute.xlu0 %1656
      %1658 = vrot.lane.b32.xlu0 %v1569, 28
      %v1659 = vpop.permute.xlu0 %1658
      %1660 = vrot.lane.b32.xlu0 %v1570, 28
      %v1661 = vpop.permute.xlu0 %1660
      %1662 = vrot.lane.b32.xlu0 %v1571, 28
      %v1663 = vpop.permute.xlu0 %1662
      %1664 = vrot.lane.b32.xlu0 %v1572, 28
      %v1665 = vpop.permute.xlu0 %1664
      %1666 = vrot.lane.b32.xlu0 %v1573, 28
      %v1667 = vpop.permute.xlu0 %1666
      %1668 = vrot.lane.b32.xlu0 %v1574, 28
      %v1669 = vpop.permute.xlu0 %1668
      %1670 = vrot.lane.b32.xlu0 %v1575, 28
      %v1671 = vpop.permute.xlu0 %1670
      %vm1704 = vcmask 261344
      %1705 = vst.msk [vmem:[#allocation3] sm:$0xff] %vm1704, %v1609
      %1706 = vst.msk [vmem:[#allocation3 + $0x8] sm:$0xff] %vm1704, %v1611
      %1707 = vst.msk [vmem:[#allocation3 + $0x10] sm:$0xff] %vm1704, %v1613
      %1708 = vst.msk [vmem:[#allocation3 + $0x18] sm:$0xff] %vm1704, %v1615
      %1709 = vst.msk [vmem:[#allocation3 + $0x20] sm:$0xff] %vm1704, %v1617
      %1710 = vst.msk [vmem:[#allocation3 + $0x28] sm:$0xff] %vm1704, %v1619
      %1711 = vst.msk [vmem:[#allocation3 + $0x30] sm:$0xff] %vm1704, %v1621
      %1712 = vst.msk [vmem:[#allocation3 + $0x38] sm:$0xff] %vm1704, %v1623
      %1713 = vst.msk [vmem:[#allocation3 + $0x40] sm:$0xff] %vm1704, %v1625
      %1714 = vst.msk [vmem:[#allocation3 + $0x48] sm:$0xff] %vm1704, %v1627
      %1715 = vst.msk [vmem:[#allocation3 + $0x50] sm:$0xff] %vm1704, %v1629
      %1716 = vst.msk [vmem:[#allocation3 + $0x58] sm:$0xff] %vm1704, %v1631
      %1717 = vst.msk [vmem:[#allocation3 + $0x60] sm:$0xff] %vm1704, %v1633
      %1718 = vst.msk [vmem:[#allocation3 + $0x68] sm:$0xff] %vm1704, %v1635
      %1719 = vst.msk [vmem:[#allocation3 + $0x70] sm:$0xff] %vm1704, %v1637
      %1720 = vst.msk [vmem:[#allocation3 + $0x78] sm:$0xff] %vm1704, %v1639
      %1721 = vst.msk [vmem:[#allocation3 + $0x80] sm:$0xff] %vm1704, %v1641
      %1722 = vst.msk [vmem:[#allocation3 + $0x88] sm:$0xff] %vm1704, %v1643
      %1723 = vst.msk [vmem:[#allocation3 + $0x90] sm:$0xff] %vm1704, %v1645
      %1724 = vst.msk [vmem:[#allocation3 + $0x98] sm:$0xff] %vm1704, %v1647
      %1725 = vst.msk [vmem:[#allocation3 + $0xa0] sm:$0xff] %vm1704, %v1649
      %1726 = vst.msk [vmem:[#allocation3 + $0xa8] sm:$0xff] %vm1704, %v1651
      %1727 = vst.msk [vmem:[#allocation3 + $0xb0] sm:$0xff] %vm1704, %v1653
      %1728 = vst.msk [vmem:[#allocation3 + $0xb8] sm:$0xff] %vm1704, %v1655
      %1729 = vst.msk [vmem:[#allocation3 + $0xc0] sm:$0xff] %vm1704, %v1657
      %1730 = vst.msk [vmem:[#allocation3 + $0xc8] sm:$0xff] %vm1704, %v1659
      %1731 = vst.msk [vmem:[#allocation3 + $0xd0] sm:$0xff] %vm1704, %v1661
      %1732 = vst.msk [vmem:[#allocation3 + $0xd8] sm:$0xff] %vm1704, %v1663
      %1733 = vst.msk [vmem:[#allocation3 + $0xe0] sm:$0xff] %vm1704, %v1665
      %1734 = vst.msk [vmem:[#allocation3 + $0xe8] sm:$0xff] %vm1704, %v1667
      %1735 = vst.msk [vmem:[#allocation3 + $0xf0] sm:$0xff] %vm1704, %v1669
      %1736 = vst.msk [vmem:[#allocation3 + $0xf8] sm:$0xff] %vm1704, %v1671
      %v1737 = vld [vmem:[%s1350 + $0x2] sm:$0xff]
      %v1738 = vld [vmem:[%s1350 + $0xa] sm:$0xff]
      %v1739 = vld [vmem:[%s1350 + $0x1a] sm:$0xff]
      %v1740 = vld [vmem:[%s1350 + $0x22] sm:$0xff]
      %v1741 = vld [vmem:[%s1350 + $0x32] sm:$0xff]
      %v1742 = vld [vmem:[%s1350 + $0x3a] sm:$0xff]
      %v1743 = vld [vmem:[%s1350 + $0x4a] sm:$0xff]
      %v1744 = vld [vmem:[%s1350 + $0x52] sm:$0xff]
      %v1745 = vld [vmem:[%s1350 + $0x62] sm:$0xff]
      %v1746 = vld [vmem:[%s1350 + $0x6a] sm:$0xff]
      %v1747 = vld [vmem:[%s1350 + $0x7a] sm:$0xff]
      %v1748 = vld [vmem:[%s1350 + $0x82] sm:$0xff]
      %v1749 = vld [vmem:[%s1350 + $0x92] sm:$0xff]
      %v1750 = vld [vmem:[%s1350 + $0x9a] sm:$0xff]
      %v1751 = vld [vmem:[%s1350 + $0xaa] sm:$0xff]
      %v1752 = vld [vmem:[%s1350 + $0xb2] sm:$0xff]
      %v1753 = vld [vmem:[%s1350 + $0xc2] sm:$0xff]
      %v1754 = vld [vmem:[%s1350 + $0xca] sm:$0xff]
      %v1755 = vld [vmem:[%s1350 + $0xda] sm:$0xff]
      %v1756 = vld [vmem:[%s1350 + $0xe2] sm:$0xff]
      %v1757 = vld [vmem:[%s1350 + $0xf2] sm:$0xff]
      %v1758 = vld [vmem:[%s1350 + $0xfa] sm:$0xff]
      %v1759 = vld [vmem:[%s1350 + $0x10a] sm:$0xff]
      %v1760 = vld [vmem:[%s1350 + $0x112] sm:$0xff]
      %v1761 = vld [vmem:[%s1350 + $0x122] sm:$0xff]
      %v1762 = vld [vmem:[%s1350 + $0x12a] sm:$0xff]
      %v1763 = vld [vmem:[%s1350 + $0x13a] sm:$0xff]
      %v1764 = vld [vmem:[%s1350 + $0x142] sm:$0xff]
      %v1765 = vld [vmem:[%s1350 + $0x152] sm:$0xff]
      %v1766 = vld [vmem:[%s1350 + $0x15a] sm:$0xff]
      %v1767 = vld [vmem:[%s1350 + $0x16a] sm:$0xff]
      %v1768 = vld [vmem:[%s1350 + $0x172] sm:$0xff]
      %1801 = vrot.lane.b32.xlu0 %v1737, 32
      %v1802 = vpop.permute.xlu0 %1801
      %1803 = vrot.lane.b32.xlu0 %v1738, 32
      %v1804 = vpop.permute.xlu0 %1803
      %1805 = vrot.lane.b32.xlu0 %v1739, 32
      %v1806 = vpop.permute.xlu0 %1805
      %1807 = vrot.lane.b32.xlu0 %v1740, 32
      %v1808 = vpop.permute.xlu0 %1807
      %1809 = vrot.lane.b32.xlu0 %v1741, 32
      %v1810 = vpop.permute.xlu0 %1809
      %1811 = vrot.lane.b32.xlu0 %v1742, 32
      %v1812 = vpop.permute.xlu0 %1811
      %1813 = vrot.lane.b32.xlu0 %v1743, 32
      %v1814 = vpop.permute.xlu0 %1813
      %1815 = vrot.lane.b32.xlu0 %v1744, 32
      %v1816 = vpop.permute.xlu0 %1815
      %1817 = vrot.lane.b32.xlu0 %v1745, 32
      %v1818 = vpop.permute.xlu0 %1817
      %1819 = vrot.lane.b32.xlu0 %v1746, 32
      %v1820 = vpop.permute.xlu0 %1819
      %1821 = vrot.lane.b32.xlu0 %v1747, 32
      %v1822 = vpop.permute.xlu0 %1821
      %1823 = vrot.lane.b32.xlu0 %v1748, 32
      %v1824 = vpop.permute.xlu0 %1823
      %1825 = vrot.lane.b32.xlu0 %v1749, 32
      %v1826 = vpop.permute.xlu0 %1825
      %1827 = vrot.lane.b32.xlu0 %v1750, 32
      %v1828 = vpop.permute.xlu0 %1827
      %1829 = vrot.lane.b32.xlu0 %v1751, 32
      %v1830 = vpop.permute.xlu0 %1829
      %1831 = vrot.lane.b32.xlu0 %v1752, 32
      %v1832 = vpop.permute.xlu0 %1831
      %1833 = vrot.lane.b32.xlu0 %v1753, 32
      %v1834 = vpop.permute.xlu0 %1833
      %1835 = vrot.lane.b32.xlu0 %v1754, 32
      %v1836 = vpop.permute.xlu0 %1835
      %1837 = vrot.lane.b32.xlu0 %v1755, 32
      %v1838 = vpop.permute.xlu0 %1837
      %1839 = vrot.lane.b32.xlu0 %v1756, 32
      %v1840 = vpop.permute.xlu0 %1839
      %1841 = vrot.lane.b32.xlu0 %v1757, 32
      %v1842 = vpop.permute.xlu0 %1841
      %1843 = vrot.lane.b32.xlu0 %v1758, 32
      %v1844 = vpop.permute.xlu0 %1843
      %1845 = vrot.lane.b32.xlu0 %v1759, 32
      %v1846 = vpop.permute.xlu0 %1845
      %1847 = vrot.lane.b32.xlu0 %v1760, 32
      %v1848 = vpop.permute.xlu0 %1847
      %1849 = vrot.lane.b32.xlu0 %v1761, 32
      %v1850 = vpop.permute.xlu0 %1849
      %1851 = vrot.lane.b32.xlu0 %v1762, 32
      %v1852 = vpop.permute.xlu0 %1851
      %1853 = vrot.lane.b32.xlu0 %v1763, 32
      %v1854 = vpop.permute.xlu0 %1853
      %1855 = vrot.lane.b32.xlu0 %v1764, 32
      %v1856 = vpop.permute.xlu0 %1855
      %1857 = vrot.lane.b32.xlu0 %v1765, 32
      %v1858 = vpop.permute.xlu0 %1857
      %1859 = vrot.lane.b32.xlu0 %v1766, 32
      %v1860 = vpop.permute.xlu0 %1859
      %1861 = vrot.lane.b32.xlu0 %v1767, 32
      %v1862 = vpop.permute.xlu0 %1861
      %1863 = vrot.lane.b32.xlu0 %v1768, 32
      %v1864 = vpop.permute.xlu0 %1863
      %vm1897 = vcmask 294144
      %1898 = vst.msk [vmem:[#allocation3] sm:$0xff] %vm1897, %v1802
      %1899 = vst.msk [vmem:[#allocation3 + $0x8] sm:$0xff] %vm1897, %v1804
      %1900 = vst.msk [vmem:[#allocation3 + $0x10] sm:$0xff] %vm1897, %v1806
      %1901 = vst.msk [vmem:[#allocation3 + $0x18] sm:$0xff] %vm1897, %v1808
      %1902 = vst.msk [vmem:[#allocation3 + $0x20] sm:$0xff] %vm1897, %v1810
      %1903 = vst.msk [vmem:[#allocation3 + $0x28] sm:$0xff] %vm1897, %v1812
      %1904 = vst.msk [vmem:[#allocation3 + $0x30] sm:$0xff] %vm1897, %v1814
      %1905 = vst.msk [vmem:[#allocation3 + $0x38] sm:$0xff] %vm1897, %v1816
      %1906 = vst.msk [vmem:[#allocation3 + $0x40] sm:$0xff] %vm1897, %v1818
      %1907 = vst.msk [vmem:[#allocation3 + $0x48] sm:$0xff] %vm1897, %v1820
      %1908 = vst.msk [vmem:[#allocation3 + $0x50] sm:$0xff] %vm1897, %v1822
      %1909 = vst.msk [vmem:[#allocation3 + $0x58] sm:$0xff] %vm1897, %v1824
      %1910 = vst.msk [vmem:[#allocation3 + $0x60] sm:$0xff] %vm1897, %v1826
      %1911 = vst.msk [vmem:[#allocation3 + $0x68] sm:$0xff] %vm1897, %v1828
      %1912 = vst.msk [vmem:[#allocation3 + $0x70] sm:$0xff] %vm1897, %v1830
      %1913 = vst.msk [vmem:[#allocation3 + $0x78] sm:$0xff] %vm1897, %v1832
      %1914 = vst.msk [vmem:[#allocation3 + $0x80] sm:$0xff] %vm1897, %v1834
      %1915 = vst.msk [vmem:[#allocation3 + $0x88] sm:$0xff] %vm1897, %v1836
      %1916 = vst.msk [vmem:[#allocation3 + $0x90] sm:$0xff] %vm1897, %v1838
      %1917 = vst.msk [vmem:[#allocation3 + $0x98] sm:$0xff] %vm1897, %v1840
      %1918 = vst.msk [vmem:[#allocation3 + $0xa0] sm:$0xff] %vm1897, %v1842
      %1919 = vst.msk [vmem:[#allocation3 + $0xa8] sm:$0xff] %vm1897, %v1844
      %1920 = vst.msk [vmem:[#allocation3 + $0xb0] sm:$0xff] %vm1897, %v1846
      %1921 = vst.msk [vmem:[#allocation3 + $0xb8] sm:$0xff] %vm1897, %v1848
      %1922 = vst.msk [vmem:[#allocation3 + $0xc0] sm:$0xff] %vm1897, %v1850
      %1923 = vst.msk [vmem:[#allocation3 + $0xc8] sm:$0xff] %vm1897, %v1852
      %1924 = vst.msk [vmem:[#allocation3 + $0xd0] sm:$0xff] %vm1897, %v1854
      %1925 = vst.msk [vmem:[#allocation3 + $0xd8] sm:$0xff] %vm1897, %v1856
      %1926 = vst.msk [vmem:[#allocation3 + $0xe0] sm:$0xff] %vm1897, %v1858
      %1927 = vst.msk [vmem:[#allocation3 + $0xe8] sm:$0xff] %vm1897, %v1860
      %1928 = vst.msk [vmem:[#allocation3 + $0xf0] sm:$0xff] %vm1897, %v1862
      %1929 = vst.msk [vmem:[#allocation3 + $0xf8] sm:$0xff] %vm1897, %v1864
      %v1930 = vld [vmem:[#allocation3] sm:$0xff]
      %v1931 = vld [vmem:[#allocation3 + $0x8] sm:$0xff]
      %v1932 = vld [vmem:[#allocation3 + $0x10] sm:$0xff]
      %v1933 = vld [vmem:[#allocation3 + $0x18] sm:$0xff]
      %v1934 = vld [vmem:[#allocation3 + $0x20] sm:$0xff]
      %v1935 = vld [vmem:[#allocation3 + $0x28] sm:$0xff]
      %v1936 = vld [vmem:[#allocation3 + $0x30] sm:$0xff]
      %v1937 = vld [vmem:[#allocation3 + $0x38] sm:$0xff]
      %v1938 = vld [vmem:[#allocation3 + $0x40] sm:$0xff]
      %v1939 = vld [vmem:[#allocation3 + $0x48] sm:$0xff]
      %v1940 = vld [vmem:[#allocation3 + $0x50] sm:$0xff]
      %v1941 = vld [vmem:[#allocation3 + $0x58] sm:$0xff]
      %v1942 = vld [vmem:[#allocation3 + $0x60] sm:$0xff]
      %v1943 = vld [vmem:[#allocation3 + $0x68] sm:$0xff]
      %v1944 = vld [vmem:[#allocation3 + $0x70] sm:$0xff]
      %v1945 = vld [vmem:[#allocation3 + $0x78] sm:$0xff]
      %v1946 = vld [vmem:[#allocation3 + $0x80] sm:$0xff]
      %v1947 = vld [vmem:[#allocation3 + $0x88] sm:$0xff]
      %v1948 = vld [vmem:[#allocation3 + $0x90] sm:$0xff]
      %v1949 = vld [vmem:[#allocation3 + $0x98] sm:$0xff]
      %v1950 = vld [vmem:[#allocation3 + $0xa0] sm:$0xff]
      %v1951 = vld [vmem:[#allocation3 + $0xa8] sm:$0xff]
      %v1952 = vld [vmem:[#allocation3 + $0xb0] sm:$0xff]
      %v1953 = vld [vmem:[#allocation3 + $0xb8] sm:$0xff]
      %v1954 = vld [vmem:[#allocation3 + $0xc0] sm:$0xff]
      %v1955 = vld [vmem:[#allocation3 + $0xc8] sm:$0xff]
      %v1956 = vld [vmem:[#allocation3 + $0xd0] sm:$0xff]
      %v1957 = vld [vmem:[#allocation3 + $0xd8] sm:$0xff]
      %v1958 = vld [vmem:[#allocation3 + $0xe0] sm:$0xff]
      %v1959 = vld [vmem:[#allocation3 + $0xe8] sm:$0xff]
      %v1960 = vld [vmem:[#allocation3 + $0xf0] sm:$0xff]
      %v1961 = vld [vmem:[#allocation3 + $0xf8] sm:$0xff]
      %v1962 = vld [vmem:[%s190] sm:$0xff]
      %v1963 = vld [vmem:[%s190 + $0x8] sm:$0xff]
      %v1964 = vld [vmem:[%s190 + $0x10] sm:$0xff]
      %v1965 = vld [vmem:[%s190 + $0x18] sm:$0xff]
      %v1966 = vld [vmem:[%s190 + $0x20] sm:$0xf]
      %vm1967 = vcmask 293888
      %v1969 = vsel %vm1967, %v1930, 0
      %v1972 = vsel %vm1967, %v1931, 0
      %v1975 = vsel %vm1967, %v1932, 0
      %v1978 = vsel %vm1967, %v1933, 0
      %v1981 = vsel %vm1967, %v1934, 0
      %v1984 = vsel %vm1967, %v1935, 0
      %v1987 = vsel %vm1967, %v1936, 0
      %v1990 = vsel %vm1967, %v1937, 0
      %v1993 = vsel %vm1967, %v1938, 0
      %v1996 = vsel %vm1967, %v1939, 0
      %v1999 = vsel %vm1967, %v1940, 0
      %v2002 = vsel %vm1967, %v1941, 0
      %v2005 = vsel %vm1967, %v1942, 0
      %v2008 = vsel %vm1967, %v1943, 0
      %v2011 = vsel %vm1967, %v1944, 0
      %v2014 = vsel %vm1967, %v1945, 0
      %v2017 = vsel %vm1967, %v1946, 0
      %v2020 = vsel %vm1967, %v1947, 0
      %v2023 = vsel %vm1967, %v1948, 0
      %v2026 = vsel %vm1967, %v1949, 0
      %v2029 = vsel %vm1967, %v1950, 0
      %v2032 = vsel %vm1967, %v1951, 0
      %v2035 = vsel %vm1967, %v1952, 0
      %v2038 = vsel %vm1967, %v1953, 0
      %v2041 = vsel %vm1967, %v1954, 0
      %v2044 = vsel %vm1967, %v1955, 0
      %v2047 = vsel %vm1967, %v1956, 0
      %v2050 = vsel %vm1967, %v1957, 0
      %v2053 = vsel %vm1967, %v1958, 0
      %v2056 = vsel %vm1967, %v1959, 0
      %v2059 = vsel %vm1967, %v1960, 0
      %v2062 = vsel %vm1967, %v1961, 0
      %vm2064 = vcmask 1043456
      %v2066 = vsel %vm2064, %v1966, 0
      %2068 = vmatpush.msra.mxu0 0.0
      %2069 = vmatpush.msra.mxu0 0.0
      %2070 = vmatpush.msra.mxu0 0.0
      %2071 = vmatpush.msra.mxu0 0.0
      %2072 = vmatpush.msra.mxu0 0.0
      %2073 = vmatpush.msra.mxu0 0.0
      %2074 = vmatpush.msra.mxu0 0.0
      %2075 = vmatpush.msra.mxu0 0.0
      %2076 = vmatpush.msra.mxu0 0.0
      %2077 = vmatpush.msra.mxu0 0.0
      %2078 = vmatpush.msra.mxu0 0.0
      %2079 = vmatpush.msra.mxu0 %v2066
      %2080 = vmatpush.msra.mxu0 %v1965
      %2081 = vmatpush.msra.mxu0 %v1964
      %2082 = vmatpush.msra.mxu0 %v1963
      %2083 = vmatpush.msra.mxu0 %v1962
      %2084 = vmatmul.f32.gmra.mxu0 %v1969
      %v2085 = vpop.f32.mrf.mxu0
      %v2086 = vadd.f32 0.0, %v2085
      %2087 = vmatmul.f32.gmra.mxu0 %v1972
      %v2088 = vpop.f32.mrf.mxu0
      %v2089 = vadd.f32 0.0, %v2088
      %2090 = vmatmul.f32.gmra.mxu0 %v1975
      %v2091 = vpop.f32.mrf.mxu0
      %v2092 = vadd.f32 0.0, %v2091
      %2093 = vmatmul.f32.gmra.mxu0 %v1978
      %v2094 = vpop.f32.mrf.mxu0
      %v2095 = vadd.f32 0.0, %v2094
      %2096 = vmatmul.f32.gmra.mxu0 %v1981
      %v2097 = vpop.f32.mrf.mxu0
      %v2098 = vadd.f32 0.0, %v2097
      %2099 = vmatmul.f32.gmra.mxu0 %v1984
      %v2100 = vpop.f32.mrf.mxu0
      %v2101 = vadd.f32 0.0, %v2100
      %2102 = vmatmul.f32.gmra.mxu0 %v1987
      %v2103 = vpop.f32.mrf.mxu0
      %v2104 = vadd.f32 0.0, %v2103
      %2105 = vmatmul.f32.gmra.mxu0 %v1990
      %v2106 = vpop.f32.mrf.mxu0
      %v2107 = vadd.f32 0.0, %v2106
      %2108 = vmatmul.f32.gmra.mxu0 %v1993
      %v2109 = vpop.f32.mrf.mxu0
      %v2110 = vadd.f32 0.0, %v2109
      %2111 = vmatmul.f32.gmra.mxu0 %v1996
      %v2112 = vpop.f32.mrf.mxu0
      %v2113 = vadd.f32 0.0, %v2112
      %2114 = vmatmul.f32.gmra.mxu0 %v1999
      %v2115 = vpop.f32.mrf.mxu0
      %v2116 = vadd.f32 0.0, %v2115
      %2117 = vmatmul.f32.gmra.mxu0 %v2002
      %v2118 = vpop.f32.mrf.mxu0
      %v2119 = vadd.f32 0.0, %v2118
      %2120 = vmatmul.f32.gmra.mxu0 %v2005
      %v2121 = vpop.f32.mrf.mxu0
      %v2122 = vadd.f32 0.0, %v2121
      %2123 = vmatmul.f32.gmra.mxu0 %v2008
      %v2124 = vpop.f32.mrf.mxu0
      %v2125 = vadd.f32 0.0, %v2124
      %2126 = vmatmul.f32.gmra.mxu0 %v2011
      %v2127 = vpop.f32.mrf.mxu0
      %v2128 = vadd.f32 0.0, %v2127
      %2129 = vmatmul.f32.gmra.mxu0 %v2014
      %v2130 = vpop.f32.mrf.mxu0
      %v2131 = vadd.f32 0.0, %v2130
      %2132 = vmatmul.f32.gmra.mxu0 %v2017
      %v2133 = vpop.f32.mrf.mxu0
      %v2134 = vadd.f32 0.0, %v2133
      %2135 = vmatmul.f32.gmra.mxu0 %v2020
      %v2136 = vpop.f32.mrf.mxu0
      %v2137 = vadd.f32 0.0, %v2136
      %2138 = vmatmul.f32.gmra.mxu0 %v2023
      %v2139 = vpop.f32.mrf.mxu0
      %v2140 = vadd.f32 0.0, %v2139
      %2141 = vmatmul.f32.gmra.mxu0 %v2026
      %v2142 = vpop.f32.mrf.mxu0
      %v2143 = vadd.f32 0.0, %v2142
      %2144 = vmatmul.f32.gmra.mxu0 %v2029
      %v2145 = vpop.f32.mrf.mxu0
      %v2146 = vadd.f32 0.0, %v2145
      %2147 = vmatmul.f32.gmra.mxu0 %v2032
      %v2148 = vpop.f32.mrf.mxu0
      %v2149 = vadd.f32 0.0, %v2148
      %2150 = vmatmul.f32.gmra.mxu0 %v2035
      %v2151 = vpop.f32.mrf.mxu0
      %v2152 = vadd.f32 0.0, %v2151
      %2153 = vmatmul.f32.gmra.mxu0 %v2038
      %v2154 = vpop.f32.mrf.mxu0
      %v2155 = vadd.f32 0.0, %v2154
      %2156 = vmatmul.f32.gmra.mxu0 %v2041
      %v2157 = vpop.f32.mrf.mxu0
      %v2158 = vadd.f32 0.0, %v2157
      %2159 = vmatmul.f32.gmra.mxu0 %v2044
      %v2160 = vpop.f32.mrf.mxu0
      %v2161 = vadd.f32 0.0, %v2160
      %2162 = vmatmul.f32.gmra.mxu0 %v2047
      %v2163 = vpop.f32.mrf.mxu0
      %v2164 = vadd.f32 0.0, %v2163
      %2165 = vmatmul.f32.gmra.mxu0 %v2050
      %v2166 = vpop.f32.mrf.mxu0
      %v2167 = vadd.f32 0.0, %v2166
      %2168 = vmatmul.f32.gmra.mxu0 %v2053
      %v2169 = vpop.f32.mrf.mxu0
      %v2170 = vadd.f32 0.0, %v2169
      %2171 = vmatmul.f32.gmra.mxu0 %v2056
      %v2172 = vpop.f32.mrf.mxu0
      %v2173 = vadd.f32 0.0, %v2172
      %2174 = vmatmul.f32.gmra.mxu0 %v2059
      %v2175 = vpop.f32.mrf.mxu0
      %v2176 = vadd.f32 0.0, %v2175
      %2177 = vmatmul.f32.gmra.mxu0 %v2062
      %v2178 = vpop.f32.mrf.mxu0
      %v2179 = vadd.f32 0.0, %v2178
      %2180 = vdwg.mxu0
      %vm2181 = vcmask 64512
      %2182 = vst.msk [vmem:[%s197] sm:$0xff] %vm2181, %v2086
      %2183 = vst.msk [vmem:[%s197 + $0x8] sm:$0xff] %vm2181, %v2089
      %2184 = vst.msk [vmem:[%s197 + $0x10] sm:$0xff] %vm2181, %v2092
      %2185 = vst.msk [vmem:[%s197 + $0x18] sm:$0xff] %vm2181, %v2095
      %2186 = vst.msk [vmem:[%s197 + $0x20] sm:$0xff] %vm2181, %v2098
      %2187 = vst.msk [vmem:[%s197 + $0x28] sm:$0xff] %vm2181, %v2101
      %2188 = vst.msk [vmem:[%s197 + $0x30] sm:$0xff] %vm2181, %v2104
      %2189 = vst.msk [vmem:[%s197 + $0x38] sm:$0xff] %vm2181, %v2107
      %2190 = vst.msk [vmem:[%s197 + $0x40] sm:$0xff] %vm2181, %v2110
      %2191 = vst.msk [vmem:[%s197 + $0x48] sm:$0xff] %vm2181, %v2113
      %2192 = vst.msk [vmem:[%s197 + $0x50] sm:$0xff] %vm2181, %v2116
      %2193 = vst.msk [vmem:[%s197 + $0x58] sm:$0xff] %vm2181, %v2119
      %2194 = vst.msk [vmem:[%s197 + $0x60] sm:$0xff] %vm2181, %v2122
      %2195 = vst.msk [vmem:[%s197 + $0x68] sm:$0xff] %vm2181, %v2125
      %2196 = vst.msk [vmem:[%s197 + $0x70] sm:$0xff] %vm2181, %v2128
      %2197 = vst.msk [vmem:[%s197 + $0x78] sm:$0xff] %vm2181, %v2131
      %2198 = vst.msk [vmem:[%s197 + $0x80] sm:$0xff] %vm2181, %v2134
      %2199 = vst.msk [vmem:[%s197 + $0x88] sm:$0xff] %vm2181, %v2137
      %2200 = vst.msk [vmem:[%s197 + $0x90] sm:$0xff] %vm2181, %v2140
      %2201 = vst.msk [vmem:[%s197 + $0x98] sm:$0xff] %vm2181, %v2143
      %2202 = vst.msk [vmem:[%s197 + $0xa0] sm:$0xff] %vm2181, %v2146
      %2203 = vst.msk [vmem:[%s197 + $0xa8] sm:$0xff] %vm2181, %v2149
      %2204 = vst.msk [vmem:[%s197 + $0xb0] sm:$0xff] %vm2181, %v2152
      %2205 = vst.msk [vmem:[%s197 + $0xb8] sm:$0xff] %vm2181, %v2155
      %2206 = vst.msk [vmem:[%s197 + $0xc0] sm:$0xff] %vm2181, %v2158
      %2207 = vst.msk [vmem:[%s197 + $0xc8] sm:$0xff] %vm2181, %v2161
      %2208 = vst.msk [vmem:[%s197 + $0xd0] sm:$0xff] %vm2181, %v2164
      %2209 = vst.msk [vmem:[%s197 + $0xd8] sm:$0xff] %vm2181, %v2167
      %2210 = vst.msk [vmem:[%s197 + $0xe0] sm:$0xff] %vm2181, %v2170
      %2211 = vst.msk [vmem:[%s197 + $0xe8] sm:$0xff] %vm2181, %v2173
      %2212 = vst.msk [vmem:[%s197 + $0xf0] sm:$0xff] %vm2181, %v2176
      %2213 = vst.msk [vmem:[%s197 + $0xf8] sm:$0xff] %vm2181, %v2179
      %s2214 = smul.u32 %s17, 2
      %s2215 = sadd.s32 %s2214, %s18
      %p2216 = scmp.lt.s32.totalorder %s2215, 3
      %s2217 = scalar_select %p2216, %s2215, 3
      %s2218 = smul.addr %s2217, 32
      %s2219 = smul.addr %s2218, 8
      %s2220 = scalar_lea.vmem %s2, %s2219
      // Predicated region
      $region29: #{conv3x3_parallel_pallas.1} parent=27 // pred_check
        %p2221 = pneg %p103
      $region30: #{conv3x3_parallel_pallas.1} parent=27 // pred_check_branch
        %2223 = sbr.rel (%p2221) target = $region32
      $region31: #{conv3x3_parallel_pallas.1} parent=27 // pred_region
        %s2224 = smul.u32 %s17, 2
        %s2225 = sadd.s32 %s2224, %s18
      $region32: #{conv3x3_parallel_pallas.1} parent=27 // pred_fallthru
        _
    $region28: #{conv3x3_parallel_pallas.1} parent=5 // pred_fallthru
      _
    %p2226 = scmp.le.s32.totalorder 2, %s8
    // Predicated region
    $region33: #{conv3x3_parallel_pallas.1} parent=5 // pred_check
      %p2227 = pneg %p2226
    $region34: #{conv3x3_parallel_pallas.1} parent=5 // pred_check_branch
      %2229 = sbr.rel (%p2227) target = $region36
    $region35: #{conv3x3_parallel_pallas.1} parent=5 // pred_region
      %s2230 = ssub.s32 %s8, 2
      // Predicated region
      $region37: #{conv3x3_parallel_pallas.1} parent=35 // pred_check
        %p2231 = pneg %p109
      $region38: #{conv3x3_parallel_pallas.1} parent=35 // pred_check_branch
        %2233 = sbr.rel (%p2231) target = $region40
      $region39: #{conv3x3_parallel_pallas.1} parent=35 // pred_region
        %s2234 = smul.u32 %s19, 2
        %s2235 = sadd.s32 %s2234, %s20
        %p2236 = scmp.lt.s32.totalorder %s2235, 3
        %s2237 = scalar_select %p2236, %s2235, 3
        %s2238 = smul.addr %s2237, 32
        %s2239 = smul.addr %s2238, 8
        %s2240 = scalar_lea.vmem %s2, %s2239
      $region40: #{conv3x3_parallel_pallas.1} parent=35 // pred_fallthru
        _
    $region36: #{conv3x3_parallel_pallas.1} parent=5 // pred_fallthru
      _
  $region6: #{conv3x3_parallel_pallas.1} parent=0 // loop_footer
    %s12 = sadd.s32 1, %s8
  $region7: #{conv3x3_parallel_pallas.1} parent=0 // loop_footer_branch
    %7 = sbr.rel target = $region3
  $region8: #{conv3x3_parallel_pallas.1} parent=0 // loop_exit
    _

</llo_original>
